<compile_context>
chip_gen: v7x
topology: tpu7x:2x2x1
jax: 0.10.0
libtpu: 0.0.40
codegen_flags: <defaults>
</compile_context>

<pallas_src>
import functools
import math

import jax
import jax.numpy as jnp
from jax import lax
from jax.experimental import pallas as pl
from jax.experimental.pallas import tpu as pltpu


def _round_up(x, m):
    return ((x + m - 1) // m) * m


def _mlp_kernel(x_ref, w1_ref, b1_ref, w2_ref, b2_ref, w3_ref, b3_ref, o_ref,
                *, sub_b, n_sub):
    """One batch tile of the fused 3-layer MLP.

    x_ref : [block_b, in_dim]  f32  (batch-major, DMA'd straight from HBM)
    wN_ref: [inN, outN]        bf16 (resident; pre-transposed PyTorch weights)
    bN_ref: [1, outN]          f32  (broadcast over the batch rows)
    o_ref : [block_b, out_dim] f32  (batch-major, written exactly once)
    """
    def body(j, carry):
        r = pl.multiple_of(j * sub_b, sub_b)
        xs = x_ref[pl.ds(r, sub_b), :].astype(jnp.bfloat16)
        # Layer 1: Linear + ReLU (hidden_act). MXU dot, f32 accumulation.
        h = jnp.dot(xs, w1_ref[...], preferred_element_type=jnp.float32)
        h = jnp.maximum(h + b1_ref[...], 0.0)
        # Layer 2: Linear + ReLU (hidden_act).
        h = jnp.dot(h.astype(jnp.bfloat16), w2_ref[...],
                    preferred_element_type=jnp.float32)
        h = jnp.maximum(h + b2_ref[...], 0.0)
        # Layer 3 (last): Linear, out_act = Identity, output_norm = None.
        o = jnp.dot(h.astype(jnp.bfloat16), w3_ref[...],
                    preferred_element_type=jnp.float32)
        o_ref[pl.ds(r, sub_b), :] = (o + b3_ref[...]).astype(o_ref.dtype)
        return carry

    # Unrolled so the LLO scheduler sees the whole tile while each sub-chunk's
    # intermediates stay within the vreg file.
    lax.fori_loop(0, n_sub, body, None, unroll=True)


def mlp_forward(x, params, *, block_b=1024, sub_b=128):
    """Fused 3-layer MLP forward.

    x: [B, input_dim] float32 (batch-major, consumed directly from HBM).
    params: PyTorch-layout weights wN: [out, in], biases bN: [out].
    block_b: DMA batch tile (rows). sub_b: in-kernel sub-chunk (rows), must be
    a multiple of 8; block_b is rounded to a multiple of sub_b.
    The minor dims (in_dim / hidden / out_dim) are kept as full array dims in
    every BlockSpec, so no (8,128) divisibility is required of them.
    """
    B, in_dim = x.shape
    w1, b1 = params["w1"], params["b1"]
    w2, b2 = params["w2"], params["b2"]
    w3, b3 = params["w3"], params["b3"]
    out_dim = w3.shape[0]

    if sub_b % 8 != 0:
        raise ValueError("sub_b must be a multiple of 8 (sublane tiling).")

    # Batch-tile selection:
    #  * clamp for small/ragged batches (avoid computing on large padded tails)
    #  * keep block_b a multiple of sub_b
    #  * when the batch is big enough, ensure >=2 grid steps so the 'parallel'
    #    axis can shard across both TensorCores on v7x.
    block_b = max(sub_b, min(_round_up(block_b, sub_b), _round_up(B, sub_b)))
    if B > 2 * sub_b and pl.cdiv(B, block_b) < 2:
        block_b = _round_up(pl.cdiv(B, 2), sub_b)
    n_blocks = pl.cdiv(B, block_b)
    n_sub = block_b // sub_b

    # Weights: PyTorch [out, in] -> [in, out] bf16 so each layer is a plain
    # (m,k)@(k,n) MXU dot. Tiny one-time transform (constant-folded under jit).
    w1t = w1.T.astype(jnp.bfloat16)
    w2t = w2.T.astype(jnp.bfloat16)
    w3t = w3.T.astype(jnp.bfloat16)
    b1c = b1.astype(jnp.float32).reshape(1, -1)
    b2c = b2.astype(jnp.float32).reshape(1, -1)
    b3c = b3.astype(jnp.float32).reshape(1, -1)

    full = lambda a: pl.BlockSpec(a.shape, lambda i: (0, 0))  # resident operand

    kernel = functools.partial(_mlp_kernel, sub_b=sub_b, n_sub=n_sub)

    out = pl.pallas_call(
        kernel,
        out_shape=jax.ShapeDtypeStruct((B, out_dim), jnp.float32),
        grid_spec=pl.GridSpec(
            grid=(n_blocks,),
            in_specs=[
                pl.BlockSpec((block_b, in_dim), lambda i: (i, 0)),  # x batch tile
                full(w1t), full(b1c),
                full(w2t), full(b2c),
                full(w3t), full(b3c),
            ],
            out_specs=pl.BlockSpec((block_b, out_dim), lambda i: (i, 0)),
        ),
        compiler_params=pltpu.CompilerParams(
            dimension_semantics=("parallel",),
        ),
    )(x, w1t, b1c, w2t, b2c, w3t, b3c)

    return out.astype(x.dtype)


def init_mlp_params(key, input_dim, output_dim, num_neurons=(64, 32)):
    """nn.Linear default init: U(-1/sqrt(fan_in), 1/sqrt(fan_in)).

    Weights stored in PyTorch layout [out, in]; biases as [out].
    """
    dims_in = [input_dim] + list(num_neurons)
    dims_out = list(num_neurons) + [output_dim]
    params = {}
    for idx, (fan_in, fan_out) in enumerate(zip(dims_in, dims_out), start=1):
        key, kw, kb = jax.random.split(key, 3)
        bound = 1.0 / math.sqrt(fan_in)
        params[f"w{idx}"] = jax.random.uniform(
            kw, (fan_out, fan_in), jnp.float32, minval=-bound, maxval=bound)
        params[f"b{idx}"] = jax.random.uniform(
            kb, (fan_out,), jnp.float32, minval=-bound, maxval=bound)
    return params


def mlp_reference(x, p):
    """Pure-JAX reference with the same bf16 operand rounding as the kernel
    (f32 accumulation), so tolerances stay tight."""
    bf = lambda a: a.astype(jnp.bfloat16).astype(jnp.float32)
    h = jnp.maximum(bf(x) @ bf(p["w1"]).T + p["b1"], 0.0)
    h = jnp.maximum(bf(h) @ bf(p["w2"]).T + p["b2"], 0.0)
    return bf(h) @ bf(p["w3"]).T + p["b3"]


if __name__ == "__main__":
    key = jax.random.PRNGKey(0)
    # Small, module-consistent shapes; non-128-multiple batch exercises the
    # partial last block and the block_b clamping / 2-step-grid heuristic.
    batch, input_dim, output_dim = 300, 16, 8

    k_x, k_p = jax.random.split(key)
    x = jax.random.normal(k_x, (batch, input_dim), dtype=jnp.float32)
    params = init_mlp_params(k_p, input_dim, output_dim, num_neurons=(64, 32))

    out = mlp_forward(x, params)
    out = jax.block_until_ready(out)

    ref = mlp_reference(x, params)
    assert out.shape == (batch, output_dim)
    assert jnp.allclose(out, ref, atol=2e-3, rtol=2e-3), "mismatch vs JAX reference"

    print("KERNEL_OK")
</pallas_src>

<mosaic_0001>
module attributes {stable_mosaic.version = 11 : i64} {
  func.func @_mlp_kernel(%arg0: i32, %arg1: memref<256x16xf32, #tpu.memory_space<vmem>>, %arg2: memref<16x64xbf16, #tpu.memory_space<vmem>>, %arg3: memref<1x64xf32, #tpu.memory_space<vmem>>, %arg4: memref<64x32xbf16, #tpu.memory_space<vmem>>, %arg5: memref<1x32xf32, #tpu.memory_space<vmem>>, %arg6: memref<32x8xbf16, #tpu.memory_space<vmem>>, %arg7: memref<1x8xf32, #tpu.memory_space<vmem>>, %arg8: memref<256x8xf32, #tpu.memory_space<vmem>>) attributes {dimension_semantics = [#tpu.dimension_semantics<parallel>], iteration_bounds = array<i64: 2>, scalar_prefetch = 0 : i64, scratch_operands = 0 : i64, tpu.core_type = #tpu.core_type<tc>, window_params = [{transform_indices = @transform_0, window_bounds = array<i64: 256, 16>}, {pipeline_mode = #tpu.pipeline_mode<synchronous>, transform_indices = @transform_1, window_bounds = array<i64: 16, 64>}, {pipeline_mode = #tpu.pipeline_mode<synchronous>, transform_indices = @transform_2, window_bounds = array<i64: 1, 64>}, {pipeline_mode = #tpu.pipeline_mode<synchronous>, transform_indices = @transform_3, window_bounds = array<i64: 64, 32>}, {pipeline_mode = #tpu.pipeline_mode<synchronous>, transform_indices = @transform_4, window_bounds = array<i64: 1, 32>}, {pipeline_mode = #tpu.pipeline_mode<synchronous>, transform_indices = @transform_5, window_bounds = array<i64: 32, 8>}, {pipeline_mode = #tpu.pipeline_mode<synchronous>, transform_indices = @transform_6, window_bounds = array<i64: 1, 8>}, {transform_indices = @transform_7, window_bounds = array<i64: 256, 8>}]} {
    %c0_i32 = arith.constant 0 : i32
    %c128_i32 = arith.constant 128 : i32
    %0 = arith.muli %c0_i32, %c128_i32 : i32
    %1 = tpu.assume_multiple %0, 128 : i32
    %2 = arith.index_cast %1 : i32 to index
    %c0 = arith.constant 0 : index
    %3 = vector.load %arg1[%2, %c0] : memref<256x16xf32, #tpu.memory_space<vmem>>, vector<128x16xf32>
    %4 = arith.truncf %3 : vector<128x16xf32> to vector<128x16xbf16>
    %c0_0 = arith.constant 0 : index
    %c0_1 = arith.constant 0 : index
    %5 = vector.load %arg2[%c0_0, %c0_1] : memref<16x64xbf16, #tpu.memory_space<vmem>>, vector<16x64xbf16>
    %cst = arith.constant dense<0.000000e+00> : vector<128x64xf32>
    %6 = tpu.matmul %4, %5, %cst {dimension_numbers = #tpu.dot_dimension_numbers<[1], [0], [0], [1], [0, 0, 1, 1], [], []>} : vector<128x16xbf16>, vector<16x64xbf16>, vector<128x64xf32> -> vector<128x64xf32>
    %c0_2 = arith.constant 0 : index
    %c0_3 = arith.constant 0 : index
    %7 = vector.load %arg3[%c0_2, %c0_3] : memref<1x64xf32, #tpu.memory_space<vmem>>, vector<1x64xf32>
    %8 = vector.broadcast %7 : vector<1x64xf32> to vector<128x64xf32>
    %9 = arith.addf %6, %8 : vector<128x64xf32>
    %cst_4 = arith.constant 0.000000e+00 : f32
    %10 = vector.broadcast %cst_4 : f32 to vector<128x64xf32>
    %11 = arith.maximumf %9, %10 : vector<128x64xf32>
    %12 = arith.truncf %11 : vector<128x64xf32> to vector<128x64xbf16>
    %c0_5 = arith.constant 0 : index
    %c0_6 = arith.constant 0 : index
    %13 = vector.load %arg4[%c0_5, %c0_6] : memref<64x32xbf16, #tpu.memory_space<vmem>>, vector<64x32xbf16>
    %cst_7 = arith.constant dense<0.000000e+00> : vector<128x32xf32>
    %14 = tpu.matmul %12, %13, %cst_7 {dimension_numbers = #tpu.dot_dimension_numbers<[1], [0], [0], [1], [0, 0, 1, 1], [], []>} : vector<128x64xbf16>, vector<64x32xbf16>, vector<128x32xf32> -> vector<128x32xf32>
    %c0_8 = arith.constant 0 : index
    %c0_9 = arith.constant 0 : index
    %15 = vector.load %arg5[%c0_8, %c0_9] : memref<1x32xf32, #tpu.memory_space<vmem>>, vector<1x32xf32>
    %16 = vector.broadcast %15 : vector<1x32xf32> to vector<128x32xf32>
    %17 = arith.addf %14, %16 : vector<128x32xf32>
    %cst_10 = arith.constant 0.000000e+00 : f32
    %18 = vector.broadcast %cst_10 : f32 to vector<128x32xf32>
    %19 = arith.maximumf %17, %18 : vector<128x32xf32>
    %20 = arith.truncf %19 : vector<128x32xf32> to vector<128x32xbf16>
    %c0_11 = arith.constant 0 : index
    %c0_12 = arith.constant 0 : index
    %21 = vector.load %arg6[%c0_11, %c0_12] : memref<32x8xbf16, #tpu.memory_space<vmem>>, vector<32x8xbf16>
    %cst_13 = arith.constant dense<0.000000e+00> : vector<128x8xf32>
    %22 = tpu.matmul %20, %21, %cst_13 {dimension_numbers = #tpu.dot_dimension_numbers<[1], [0], [0], [1], [0, 0, 1, 1], [], []>} : vector<128x32xbf16>, vector<32x8xbf16>, vector<128x8xf32> -> vector<128x8xf32>
    %c0_14 = arith.constant 0 : index
    %c0_15 = arith.constant 0 : index
    %23 = vector.load %arg7[%c0_14, %c0_15] : memref<1x8xf32, #tpu.memory_space<vmem>>, vector<1x8xf32>
    %24 = vector.broadcast %23 : vector<1x8xf32> to vector<128x8xf32>
    %25 = arith.addf %22, %24 : vector<128x8xf32>
    %26 = arith.index_cast %1 : i32 to index
    %c0_16 = arith.constant 0 : index
    %27 = vector.load %arg8[%26, %c0_16] : memref<256x8xf32, #tpu.memory_space<vmem>>, vector<128x8xf32>
    tpu.vector_store %arg8[%26, %c0_16], %25 {strides = array<i32>} : memref<256x8xf32, #tpu.memory_space<vmem>>, vector<128x8xf32>,
    %c1_i32 = arith.constant 1 : i32
    %c128_i32_17 = arith.constant 128 : i32
    %28 = arith.muli %c1_i32, %c128_i32_17 : i32
    %29 = tpu.assume_multiple %28, 128 : i32
    %30 = arith.index_cast %29 : i32 to index
    %c0_18 = arith.constant 0 : index
    %31 = vector.load %arg1[%30, %c0_18] : memref<256x16xf32, #tpu.memory_space<vmem>>, vector<128x16xf32>
    %32 = arith.truncf %31 : vector<128x16xf32> to vector<128x16xbf16>
    %c0_19 = arith.constant 0 : index
    %c0_20 = arith.constant 0 : index
    %33 = vector.load %arg2[%c0_19, %c0_20] : memref<16x64xbf16, #tpu.memory_space<vmem>>, vector<16x64xbf16>
    %cst_21 = arith.constant dense<0.000000e+00> : vector<128x64xf32>
    %34 = tpu.matmul %32, %33, %cst_21 {dimension_numbers = #tpu.dot_dimension_numbers<[1], [0], [0], [1], [0, 0, 1, 1], [], []>} : vector<128x16xbf16>, vector<16x64xbf16>, vector<128x64xf32> -> vector<128x64xf32>
    %c0_22 = arith.constant 0 : index
    %c0_23 = arith.constant 0 : index
    %35 = vector.load %arg3[%c0_22, %c0_23] : memref<1x64xf32, #tpu.memory_space<vmem>>, vector<1x64xf32>
    %36 = vector.broadcast %35 : vector<1x64xf32> to vector<128x64xf32>
    %37 = arith.addf %34, %36 : vector<128x64xf32>
    %cst_24 = arith.constant 0.000000e+00 : f32
    %38 = vector.broadcast %cst_24 : f32 to vector<128x64xf32>
    %39 = arith.maximumf %37, %38 : vector<128x64xf32>
    %40 = arith.truncf %39 : vector<128x64xf32> to vector<128x64xbf16>
    %c0_25 = arith.constant 0 : index
    %c0_26 = arith.constant 0 : index
    %41 = vector.load %arg4[%c0_25, %c0_26] : memref<64x32xbf16, #tpu.memory_space<vmem>>, vector<64x32xbf16>
    %cst_27 = arith.constant dense<0.000000e+00> : vector<128x32xf32>
    %42 = tpu.matmul %40, %41, %cst_27 {dimension_numbers = #tpu.dot_dimension_numbers<[1], [0], [0], [1], [0, 0, 1, 1], [], []>} : vector<128x64xbf16>, vector<64x32xbf16>, vector<128x32xf32> -> vector<128x32xf32>
    %c0_28 = arith.constant 0 : index
    %c0_29 = arith.constant 0 : index
    %43 = vector.load %arg5[%c0_28, %c0_29] : memref<1x32xf32, #tpu.memory_space<vmem>>, vector<1x32xf32>
    %44 = vector.broadcast %43 : vector<1x32xf32> to vector<128x32xf32>
    %45 = arith.addf %42, %44 : vector<128x32xf32>
    %cst_30 = arith.constant 0.000000e+00 : f32
    %46 = vector.broadcast %cst_30 : f32 to vector<128x32xf32>
    %47 = arith.maximumf %45, %46 : vector<128x32xf32>
    %48 = arith.truncf %47 : vector<128x32xf32> to vector<128x32xbf16>
    %c0_31 = arith.constant 0 : index
    %c0_32 = arith.constant 0 : index
    %49 = vector.load %arg6[%c0_31, %c0_32] : memref<32x8xbf16, #tpu.memory_space<vmem>>, vector<32x8xbf16>
    %cst_33 = arith.constant dense<0.000000e+00> : vector<128x8xf32>
    %50 = tpu.matmul %48, %49, %cst_33 {dimension_numbers = #tpu.dot_dimension_numbers<[1], [0], [0], [1], [0, 0, 1, 1], [], []>} : vector<128x32xbf16>, vector<32x8xbf16>, vector<128x8xf32> -> vector<128x8xf32>
    %c0_34 = arith.constant 0 : index
    %c0_35 = arith.constant 0 : index
    %51 = vector.load %arg7[%c0_34, %c0_35] : memref<1x8xf32, #tpu.memory_space<vmem>>, vector<1x8xf32>
    %52 = vector.broadcast %51 : vector<1x8xf32> to vector<128x8xf32>
    %53 = arith.addf %50, %52 : vector<128x8xf32>
    %54 = arith.index_cast %29 : i32 to index
    %c0_36 = arith.constant 0 : index
    %55 = vector.load %arg8[%54, %c0_36] : memref<256x8xf32, #tpu.memory_space<vmem>>, vector<128x8xf32>
    tpu.vector_store %arg8[%54, %c0_36], %53 {strides = array<i32>} : memref<256x8xf32, #tpu.memory_space<vmem>>, vector<128x8xf32>,
    %c2_i32 = arith.constant 2 : i32
    return
  }
  func.func @transform_0(%arg0: i32) -> (i32, i32) {
    %c0_i32 = arith.constant 0 : i32
    %c0_i32_0 = arith.constant 0 : i32
    return %arg0, %c0_i32 : i32, i32
  }
  func.func @transform_1(%arg0: i32) -> (i32, i32) {
    %c0_i32 = arith.constant 0 : i32
    %c0_i32_0 = arith.constant 0 : i32
    %c0_i32_1 = arith.constant 0 : i32
    return %c0_i32, %c0_i32_0 : i32, i32
  }
  func.func @transform_2(%arg0: i32) -> (i32, i32) {
    %c0_i32 = arith.constant 0 : i32
    %c0_i32_0 = arith.constant 0 : i32
    %c0_i32_1 = arith.constant 0 : i32
    return %c0_i32, %c0_i32_0 : i32, i32
  }
  func.func @transform_3(%arg0: i32) -> (i32, i32) {
    %c0_i32 = arith.constant 0 : i32
    %c0_i32_0 = arith.constant 0 : i32
    %c0_i32_1 = arith.constant 0 : i32
    return %c0_i32, %c0_i32_0 : i32, i32
  }
  func.func @transform_4(%arg0: i32) -> (i32, i32) {
    %c0_i32 = arith.constant 0 : i32
    %c0_i32_0 = arith.constant 0 : i32
    %c0_i32_1 = arith.constant 0 : i32
    return %c0_i32, %c0_i32_0 : i32, i32
  }
  func.func @transform_5(%arg0: i32) -> (i32, i32) {
    %c0_i32 = arith.constant 0 : i32
    %c0_i32_0 = arith.constant 0 : i32
    %c0_i32_1 = arith.constant 0 : i32
    return %c0_i32, %c0_i32_0 : i32, i32
  }
  func.func @transform_6(%arg0: i32) -> (i32, i32) {
    %c0_i32 = arith.constant 0 : i32
    %c0_i32_0 = arith.constant 0 : i32
    %c0_i32_1 = arith.constant 0 : i32
    return %c0_i32, %c0_i32_0 : i32, i32
  }
  func.func @transform_7(%arg0: i32) -> (i32, i32) {
    %c0_i32 = arith.constant 0 : i32
    %c0_i32_0 = arith.constant 0 : i32
    return %arg0, %c0_i32 : i32, i32
  }
}

</mosaic_0001>

<llo_original>
// kernel: tpu_custom_call.1
$region0: #{tpu_custom_call.1}
  #allocation0 [shape = 'u32[]', space=smem, size = 0x4, offset = 0x4, fixed_abs, tag = 'smem constant byte address 0x4 - core index']
  #allocation1 [shape = 'u32[144,128]{1,0:T(1,128)}', space=vmem, size = 0x12000, scoped, tag = 'internal scratch']
  %s0 = inlined_call_operand.vmem [shape: f32[300,16], index: 0, kind: input, shape index: {}]
  %s1 = inlined_call_operand.vmem [shape: bf16[16,64], index: 1, kind: input, shape index: {}]
  %s2 = inlined_call_operand.vmem [shape: f32[1,64], index: 2, kind: input, shape index: {}]
  %s3 = inlined_call_operand.vmem [shape: bf16[64,32], index: 3, kind: input, shape index: {}]
  %s4 = inlined_call_operand.vmem [shape: f32[1,32], index: 4, kind: input, shape index: {}]
  %s5 = inlined_call_operand.vmem [shape: bf16[32,8], index: 5, kind: input, shape index: {}]
  %s6 = inlined_call_operand.vmem [shape: f32[1,8], index: 6, kind: input, shape index: {}]
  %s7 = inlined_call_operand.vmem [shape: f32[300,8], index: 7, kind: output, shape index: {}]
  %s8 = sld [smem:[#allocation0]]
  $region109: #{tpu_custom_call.1} parent=0
    _
  %s10 = ssub.s32 1, %s8
  %s11 = scalar_select 0, %s10, %s8
  $region1: #{tpu_custom_call.1} parent=0
    #allocation2 [shape = 'u8[262144]{0}', space=vmem, size = 0x40000, scoped, tag = 'output window, operand 0']
    loop: start=0, step=1, limit=4
    $region2: #{tpu_custom_call.1} parent=1 // loop_pre_header
      _
    $region3: #{tpu_custom_call.1} parent=1 // loop_header
      %s13 = sphi 0, %s17
      %p14 = scmp.ge.s32.totalorder %s13, 4
      %s23 = sphi 0, %s25
      %s26 = sphi 0, %s23
      %s27 = sphi 0, %s26
      %s43 = sphi 0, %s27
      %s47 = sphi 0, %s47
      %s49 = sphi 0, %s47
      %s50 = sphi 0, %s49
      %s64 = sphi 0, %s50
      %s68 = sphi 0, %s68
      %s70 = sphi 0, %s68
      %s71 = sphi 0, %s70
      %s85 = sphi 0, %s71
      %s89 = sphi 0, %s89
      %s91 = sphi 0, %s89
      %s92 = sphi 0, %s91
      %s106 = sphi 0, %s92
      %s110 = sphi 0, %s110
      %s112 = sphi 0, %s110
      %s113 = sphi 0, %s112
      %s127 = sphi 0, %s113
      %s131 = sphi 0, %s131
      %s133 = sphi 0, %s131
      %s134 = sphi 0, %s133
      %s148 = sphi 0, %s134
      %s152 = sphi 0, %s152
      %s154 = sphi 0, %s152
      %s155 = sphi 0, %s154
      %s169 = sphi 0, %s155
      %s175 = sphi 0, %s177
      %s178 = sphi 0, %s175
      %s179 = sphi 0, %s178
      %s195 = sphi 0, %s179
    $region4: #{tpu_custom_call.1} parent=1 // loop_header_branch
      %16 = sbr.rel (%p14) target = $region8
    $region5: #{tpu_custom_call.1} parent=1 // loop_body
      %s18 = ssub.s32 %s13, 1
      %s19 = ssub.s32 %s13, 2
      %s20 = sadd.s32 %s13, 1
      %s21 = ssub.s32 %s13, %s20
      %p22 = scmp.eq.s32.totalorder %s21, 0
      %s24 = sadd.s32 %s23, 1
      %s25 = scalar_select %p22, %s23, %s24
      %p28 = pneg %p22
      %p29 = scmp.eq.s32.totalorder %s13, 1
      %p30 = por %p28, %p29
      %p31 = scmp.ne.s32.totalorder %s23, %s26
      %p32 = scmp.eq.s32.totalorder %s13, 0
      %p33 = por %p31, %p32
      %p34 = scmp.ne.s32.totalorder %s23, %s26
      %p35 = scmp.eq.s32.totalorder %s18, 1
      %p36 = por %p34, %p35
      %p37 = scmp.ne.s32.totalorder %s26, %s27
      %p38 = scmp.eq.s32.totalorder %s18, 0
      %p39 = por %p37, %p38
      %p40 = scmp.ne.s32.totalorder %s26, %s27
      %p41 = scmp.eq.s32.totalorder %s19, 1
      %p42 = por %p40, %p41
      %p44 = scmp.ne.s32.totalorder %s27, %s43
      %p45 = scmp.eq.s32.totalorder %s19, 0
      %p46 = por %p44, %p45
      %s48 = sadd.s32 %s47, 1
      %p51 = scmp.eq.s32.totalorder %s13, 1
      %p52 = scmp.ne.s32.totalorder %s47, %s49
      %p53 = scmp.eq.s32.totalorder %s13, 0
      %p54 = por %p52, %p53
      %p55 = scmp.ne.s32.totalorder %s47, %s49
      %p56 = scmp.eq.s32.totalorder %s18, 1
      %p57 = por %p55, %p56
      %p58 = scmp.ne.s32.totalorder %s49, %s50
      %p59 = scmp.eq.s32.totalorder %s18, 0
      %p60 = por %p58, %p59
      %p61 = scmp.ne.s32.totalorder %s49, %s50
      %p62 = scmp.eq.s32.totalorder %s19, 1
      %p63 = por %p61, %p62
      %p65 = scmp.ne.s32.totalorder %s50, %s64
      %p66 = scmp.eq.s32.totalorder %s19, 0
      %p67 = por %p65, %p66
      %s69 = sadd.s32 %s68, 1
      %p72 = scmp.eq.s32.totalorder %s13, 1
      %p73 = scmp.ne.s32.totalorder %s68, %s70
      %p74 = scmp.eq.s32.totalorder %s13, 0
      %p75 = por %p73, %p74
      %p76 = scmp.ne.s32.totalorder %s68, %s70
      %p77 = scmp.eq.s32.totalorder %s18, 1
      %p78 = por %p76, %p77
      %p79 = scmp.ne.s32.totalorder %s70, %s71
      %p80 = scmp.eq.s32.totalorder %s18, 0
      %p81 = por %p79, %p80
      %p82 = scmp.ne.s32.totalorder %s70, %s71
      %p83 = scmp.eq.s32.totalorder %s19, 1
      %p84 = por %p82, %p83
      %p86 = scmp.ne.s32.totalorder %s71, %s85
      %p87 = scmp.eq.s32.totalorder %s19, 0
      %p88 = por %p86, %p87
      %s90 = sadd.s32 %s89, 1
      %p93 = scmp.eq.s32.totalorder %s13, 1
      %p94 = scmp.ne.s32.totalorder %s89, %s91
      %p95 = scmp.eq.s32.totalorder %s13, 0
      %p96 = por %p94, %p95
      %p97 = scmp.ne.s32.totalorder %s89, %s91
      %p98 = scmp.eq.s32.totalorder %s18, 1
      %p99 = por %p97, %p98
      %p100 = scmp.ne.s32.totalorder %s91, %s92
      %p101 = scmp.eq.s32.totalorder %s18, 0
      %p102 = por %p100, %p101
      %p103 = scmp.ne.s32.totalorder %s91, %s92
      %p104 = scmp.eq.s32.totalorder %s19, 1
      %p105 = por %p103, %p104
      %p107 = scmp.ne.s32.totalorder %s92, %s106
      %p108 = scmp.eq.s32.totalorder %s19, 0
      %p109 = por %p107, %p108
      %s111 = sadd.s32 %s110, 1
      %p114 = scmp.eq.s32.totalorder %s13, 1
      %p115 = scmp.ne.s32.totalorder %s110, %s112
      %p116 = scmp.eq.s32.totalorder %s13, 0
      %p117 = por %p115, %p116
      %p118 = scmp.ne.s32.totalorder %s110, %s112
      %p119 = scmp.eq.s32.totalorder %s18, 1
      %p120 = por %p118, %p119
      %p121 = scmp.ne.s32.totalorder %s112, %s113
      %p122 = scmp.eq.s32.totalorder %s18, 0
      %p123 = por %p121, %p122
      %p124 = scmp.ne.s32.totalorder %s112, %s113
      %p125 = scmp.eq.s32.totalorder %s19, 1
      %p126 = por %p124, %p125
      %p128 = scmp.ne.s32.totalorder %s113, %s127
      %p129 = scmp.eq.s32.totalorder %s19, 0
      %p130 = por %p128, %p129
      %s132 = sadd.s32 %s131, 1
      %p135 = scmp.eq.s32.totalorder %s13, 1
      %p136 = scmp.ne.s32.totalorder %s131, %s133
      %p137 = scmp.eq.s32.totalorder %s13, 0
      %p138 = por %p136, %p137
      %p139 = scmp.ne.s32.totalorder %s131, %s133
      %p140 = scmp.eq.s32.totalorder %s18, 1
      %p141 = por %p139, %p140
      %p142 = scmp.ne.s32.totalorder %s133, %s134
      %p143 = scmp.eq.s32.totalorder %s18, 0
      %p144 = por %p142, %p143
      %p145 = scmp.ne.s32.totalorder %s133, %s134
      %p146 = scmp.eq.s32.totalorder %s19, 1
      %p147 = por %p145, %p146
      %p149 = scmp.ne.s32.totalorder %s134, %s148
      %p150 = scmp.eq.s32.totalorder %s19, 0
      %p151 = por %p149, %p150
      %s153 = sadd.s32 %s152, 1
      %p156 = scmp.eq.s32.totalorder %s13, 1
      %p157 = scmp.ne.s32.totalorder %s152, %s154
      %p158 = scmp.eq.s32.totalorder %s13, 0
      %p159 = por %p157, %p158
      %p160 = scmp.ne.s32.totalorder %s152, %s154
      %p161 = scmp.eq.s32.totalorder %s18, 1
      %p162 = por %p160, %p161
      %p163 = scmp.ne.s32.totalorder %s154, %s155
      %p164 = scmp.eq.s32.totalorder %s18, 0
      %p165 = por %p163, %p164
      %p166 = scmp.ne.s32.totalorder %s154, %s155
      %p167 = scmp.eq.s32.totalorder %s19, 1
      %p168 = por %p166, %p167
      %p170 = scmp.ne.s32.totalorder %s155, %s169
      %p171 = scmp.eq.s32.totalorder %s19, 0
      %p172 = por %p170, %p171
      %s173 = ssub.s32 %s13, %s20
      %p174 = scmp.eq.s32.totalorder %s173, 0
      %s176 = sadd.s32 %s175, 1
      %s177 = scalar_select %p174, %s175, %s176
      %p180 = pneg %p174
      %p181 = scmp.eq.s32.totalorder %s13, 1
      %p182 = por %p180, %p181
      %p183 = scmp.ne.s32.totalorder %s175, %s178
      %p184 = scmp.eq.s32.totalorder %s13, 0
      %p185 = por %p183, %p184
      %p186 = scmp.ne.s32.totalorder %s175, %s178
      %p187 = scmp.eq.s32.totalorder %s18, 1
      %p188 = por %p186, %p187
      %p189 = scmp.ne.s32.totalorder %s178, %s179
      %p190 = scmp.eq.s32.totalorder %s18, 0
      %p191 = por %p189, %p190
      %p192 = scmp.ne.s32.totalorder %s178, %s179
      %p193 = scmp.eq.s32.totalorder %s19, 1
      %p194 = por %p192, %p193
      %p196 = scmp.ne.s32.totalorder %s179, %s195
      %p197 = scmp.eq.s32.totalorder %s19, 0
      %p198 = por %p196, %p197
      %p199 = scmp.le.s32.totalorder 1, %s13
      %p200 = scmp.lt.s32.totalorder %s13, 3
      %p201 = pnand %p199, %p200
      %p202 = pneg %p201
      // Predicated region
      $region9: #{tpu_custom_call.1} parent=5 // pred_check
        _
      $region10: #{tpu_custom_call.1} parent=5 // pred_check_branch
        %204 = sbr.rel (%p201) target = $region12
      $region11: #{tpu_custom_call.1} parent=5 // pred_region
        %s205 = ssub.s32 %s13, 1
        // Predicated region
        $region13: #{tpu_custom_call.1} parent=11 // pred_check
          %p206 = pneg %p60
        $region14: #{tpu_custom_call.1} parent=11 // pred_check_branch
          %208 = sbr.rel (%p206) target = $region16
        $region15: #{tpu_custom_call.1} parent=11 // pred_region
          _
        $region16: #{tpu_custom_call.1} parent=11 // pred_fallthru
          _
        // Predicated region
        $region17: #{tpu_custom_call.1} parent=11 // pred_check
          %p209 = pneg %p81
        $region18: #{tpu_custom_call.1} parent=11 // pred_check_branch
          %211 = sbr.rel (%p209) target = $region20
        $region19: #{tpu_custom_call.1} parent=11 // pred_region
          _
        $region20: #{tpu_custom_call.1} parent=11 // pred_fallthru
          _
        // Predicated region
        $region21: #{tpu_custom_call.1} parent=11 // pred_check
          %p212 = pneg %p102
        $region22: #{tpu_custom_call.1} parent=11 // pred_check_branch
          %214 = sbr.rel (%p212) target = $region24
        $region23: #{tpu_custom_call.1} parent=11 // pred_region
          _
        $region24: #{tpu_custom_call.1} parent=11 // pred_fallthru
          _
        // Predicated region
        $region25: #{tpu_custom_call.1} parent=11 // pred_check
          %p215 = pneg %p123
        $region26: #{tpu_custom_call.1} parent=11 // pred_check_branch
          %217 = sbr.rel (%p215) target = $region28
        $region27: #{tpu_custom_call.1} parent=11 // pred_region
          _
        $region28: #{tpu_custom_call.1} parent=11 // pred_fallthru
          _
        // Predicated region
        $region29: #{tpu_custom_call.1} parent=11 // pred_check
          %p218 = pneg %p144
        $region30: #{tpu_custom_call.1} parent=11 // pred_check_branch
          %220 = sbr.rel (%p218) target = $region32
        $region31: #{tpu_custom_call.1} parent=11 // pred_region
          _
        $region32: #{tpu_custom_call.1} parent=11 // pred_fallthru
          _
        // Predicated region
        $region33: #{tpu_custom_call.1} parent=11 // pred_check
          %p221 = pneg %p165
        $region34: #{tpu_custom_call.1} parent=11 // pred_check_branch
          %223 = sbr.rel (%p221) target = $region36
        $region35: #{tpu_custom_call.1} parent=11 // pred_region
          _
        $region36: #{tpu_custom_call.1} parent=11 // pred_fallthru
          _
      $region12: #{tpu_custom_call.1} parent=5 // pred_fallthru
        _
      %p224 = scmp.lt.s32.totalorder %s13, 2
      // Predicated region
      $region37: #{tpu_custom_call.1} parent=5 // pred_check
        %p225 = pneg %p224
      $region38: #{tpu_custom_call.1} parent=5 // pred_check_branch
        %227 = sbr.rel (%p225) target = $region40
      $region39: #{tpu_custom_call.1} parent=5 // pred_region
        // Predicated region
        $region41: #{tpu_custom_call.1} parent=39 // pred_check
          %p228 = pneg %p33
        $region42: #{tpu_custom_call.1} parent=39 // pred_check_branch
          %230 = sbr.rel (%p228) target = $region44
        $region43: #{tpu_custom_call.1} parent=39 // pred_region
          %s231 = smul.u32 32, %s13
          %s232 = ssub.s32 38, %s231
          %p233 = scmp.lt.s32.totalorder %s232, 32
          %s234 = scalar_select %p233, %s232, 32
          %s235 = smul.u32 128, %s234
          %p236 = scmp.lt.s32.totalorder %s231, 37
          %s237 = scalar_select %p236, %s231, 37
          %s238 = smul.addr %s237, 8
          %s239 = scalar_lea.vmem %s0, %s238
          %s240 = smul.u32 32, %s13
          %s241 = ssub.s32 38, %s240
          %p242 = scmp.lt.s32.totalorder %s241, 32
          %s243 = scalar_select %p242, %s241, 32
          %s244 = smul.u32 128, %s243
        $region44: #{tpu_custom_call.1} parent=39 // pred_fallthru
          _
      $region40: #{tpu_custom_call.1} parent=5 // pred_fallthru
        _
      %p245 = scmp.le.s32.totalorder 1, %s13
      %p246 = scmp.lt.s32.totalorder %s13, 3
      %p247 = pnand %p245, %p246
      %p248 = pneg %p247
      // Predicated region
      $region45: #{tpu_custom_call.1} parent=5 // pred_check
        _
      $region46: #{tpu_custom_call.1} parent=5 // pred_check_branch
        %250 = sbr.rel (%p247) target = $region48
      $region47: #{tpu_custom_call.1} parent=5 // pred_region
        %s251 = ssub.s32 %s13, 1
        %s252 = smul.u32 32, %s18
        %s253 = ssub.s32 38, %s252
        %p254 = scmp.lt.s32.totalorder %s253, 32
        %s255 = scalar_select %p254, %s253, 32
        %s256 = smul.u32 128, %s255
        %p257 = scmp.lt.s32.totalorder %s252, 37
        %s258 = scalar_select %p257, %s252, 37
        %s259 = smul.addr %s258, 8
        %s260 = scalar_lea.vmem %s0, %s259
        %p261 = pneg %p39
        %p262 = pneg %p36
        %p263 = pneg %p60
        %p264 = pneg %p57
        %p265 = pneg %p81
        %p266 = pneg %p78
        %p267 = pneg %p102
        %p268 = pneg %p99
        %p269 = pneg %p123
        %p270 = pneg %p120
        %p271 = pneg %p144
        %p272 = pneg %p141
        %p273 = pneg %p165
        %p274 = pneg %p162
        %p275 = pneg %p191
        %p276 = pneg %p188
        %s277 = sand.u32 %s178, 1
        %s278 = sand.u32 %s178, 1
        %s279 = smul.addr %s278, 256
        %s280 = scalar_lea.vmem [#allocation2], %s279
        %s281 = smul.u32 32, %s18
        %s282 = ssub.s32 38, %s281
        %p283 = scmp.lt.s32.totalorder %s282, 32
        %s284 = scalar_select %p283, %s282, 32
        %s285 = smul.u32 128, %s284
        %p286 = scmp.lt.s32.totalorder %s281, 37
        %s287 = scalar_select %p286, %s281, 37
        %s288 = smul.addr %s287, 8
        %s289 = scalar_lea.vmem %s0, %s288
        %s290 = smul.u32 32, %s18
        %s291 = ssub.s32 38, %s290
        %p292 = scmp.lt.s32.totalorder %s291, 32
        %s293 = scalar_select %p292, %s291, 32
        %s294 = smul.u32 128, %s293
        %s295 = smul.u32 32, %s18
        %s296 = ssub.s32 38, %s295
        %p297 = scmp.lt.s32.totalorder %s296, 32
        %s298 = scalar_select %p297, %s296, 32
        %s299 = smul.u32 128, %s298
        %v301 = vld [vmem:[%s289] sm:$0xff]
        %v302 = vld [vmem:[%s289 + $0x8] sm:$0xff]
        %v303 = vld [vmem:[%s289 + $0x10] sm:$0xff]
        %v304 = vld [vmem:[%s289 + $0x18] sm:$0xff]
        %v305 = vld [vmem:[%s289 + $0x20] sm:$0xff]
        %v306 = vld [vmem:[%s289 + $0x28] sm:$0xff]
        %v307 = vld [vmem:[%s289 + $0x30] sm:$0xff]
        %v308 = vld [vmem:[%s289 + $0x38] sm:$0xff]
        %v309 = vld [vmem:[%s289 + $0x40] sm:$0xff]
        %v310 = vld [vmem:[%s289 + $0x48] sm:$0xff]
        %v311 = vld [vmem:[%s289 + $0x50] sm:$0xff]
        %v312 = vld [vmem:[%s289 + $0x58] sm:$0xff]
        %v313 = vld [vmem:[%s289 + $0x60] sm:$0xff]
        %v314 = vld [vmem:[%s289 + $0x68] sm:$0xff]
        %v315 = vld [vmem:[%s289 + $0x70] sm:$0xff]
        %v316 = vld [vmem:[%s289 + $0x78] sm:$0xff]
        %v317 = vpack.c.bf16 %v302, %v301
        %v318 = vpack.c.bf16 %v304, %v303
        %v319 = vpack.c.bf16 %v306, %v305
        %v320 = vpack.c.bf16 %v308, %v307
        %v321 = vpack.c.bf16 %v310, %v309
        %v322 = vpack.c.bf16 %v312, %v311
        %v323 = vpack.c.bf16 %v314, %v313
        %v324 = vpack.c.bf16 %v316, %v315
        %v325 = vld [vmem:[%s1] sm:$0xf]
        %v326 = vld [vmem:[%s1 + $0x4] sm:$0xf]
        %v327 = vld [vmem:[%s2] sm:$0x1]
        %v329 = vlaneseq
        %v330 = vshrl.u32 %v329, 7
        %v331 = vsub.s32 0, %v330
        %v332 = vrot.slane %v327, %v331
        %v336 = vunpack.c.l.b16 %v325
        %v337 = vunpack.c.l.b16 %v326
        %v338 = vpack.c.b16 %v337, %v336
        %vm340 = vcmask 130048
        %v342 = vsel %vm340, %v317, 0
        %v345 = vsel %vm340, %v318, 0
        %v348 = vsel %vm340, %v319, 0
        %v351 = vsel %vm340, %v320, 0
        %v354 = vsel %vm340, %v321, 0
        %v357 = vsel %vm340, %v322, 0
        %v360 = vsel %vm340, %v323, 0
        %v363 = vsel %vm340, %v324, 0
        %365 = vmatprep.subr.bf16.mxu0 0
        %366 = vmatpush1.bf16.msra.mxu0 %v338
        %367 = vmatprep.subr.bf16.mxu0 0
        %368 = vmatpush1.bf16.msra.mxu0 0
        %369 = vmatprep.subr.bf16.mxu0 0
        %370 = vmatpush1.bf16.msra.mxu0 0
        %371 = vmatprep.subr.bf16.mxu0 0
        %372 = vmatpush1.bf16.msra.mxu0 0
        %373 = vmatprep.subr.bf16.mxu0 0
        %374 = vmatpush1.bf16.msra.mxu0 0
        %375 = vmatprep.subr.bf16.mxu0 0
        %376 = vmatpush1.bf16.msra.mxu0 0
        %377 = vmatprep.subr.bf16.mxu0 0
        %378 = vmatpush1.bf16.msra.mxu0 0
        %379 = vmatprep.subr.bf16.mxu0 0
        %380 = vmatpush1.bf16.msra.mxu0 0
        %381 = vmatprep.subr.bf16.mxu0 0
        %382 = vmatpush1.bf16.msra.mxu0 0
        %383 = vmatprep.subr.bf16.mxu0 0
        %384 = vmatpush1.bf16.msra.mxu0 0
        %385 = vmatprep.subr.bf16.mxu0 0
        %386 = vmatpush1.bf16.msra.mxu0 0
        %387 = vmatprep.subr.bf16.mxu0 0
        %388 = vmatpush1.bf16.msra.mxu0 0
        %389 = vmatprep.subr.bf16.mxu0 0
        %390 = vmatpush1.bf16.msra.mxu0 0
        %391 = vmatprep.subr.bf16.mxu0 0
        %392 = vmatpush1.bf16.msra.mxu0 0
        %393 = vmatprep.subr.bf16.mxu0 0
        %394 = vmatpush1.bf16.msra.mxu0 0
        %395 = vmatprep.subr.bf16.mxu0 0
        %396 = vmatpush1.bf16.msra.mxu0 0
        %397 = vmatprep.mubr.bf16.mxu0 0
        %398 = vmatmul.mubr.bf16.gmra.mrb[0].mxu0 %v342
        %v399 = vpop.f32.mrb[0].mxu0
        %v400 = vadd.f32 %v332, %v399
        %v401 = vpop.f32.mrb[0].mxu0
        %v402 = vpop.f32.mrb[0].mxu0
        %v403 = vadd.f32 %v332, %v402
        %v404 = vpop.f32.mrb[0].mxu0
        %405 = vmatprep.mubr.bf16.mxu0 0
        %406 = vmatmul.mubr.bf16.gmra.mrb[0].mxu0 %v345
        %v407 = vpop.f32.mrb[0].mxu0
        %v408 = vadd.f32 %v332, %v407
        %v409 = vpop.f32.mrb[0].mxu0
        %v410 = vpop.f32.mrb[0].mxu0
        %v411 = vadd.f32 %v332, %v410
        %v412 = vpop.f32.mrb[0].mxu0
        %413 = vmatprep.mubr.bf16.mxu0 0
        %414 = vmatmul.mubr.bf16.gmra.mrb[0].mxu0 %v348
        %v415 = vpop.f32.mrb[0].mxu0
        %v416 = vadd.f32 %v332, %v415
        %v417 = vpop.f32.mrb[0].mxu0
        %v418 = vpop.f32.mrb[0].mxu0
        %v419 = vadd.f32 %v332, %v418
        %v420 = vpop.f32.mrb[0].mxu0
        %421 = vmatprep.mubr.bf16.mxu0 0
        %422 = vmatmul.mubr.bf16.gmra.mrb[0].mxu0 %v351
        %v423 = vpop.f32.mrb[0].mxu0
        %v424 = vadd.f32 %v332, %v423
        %v425 = vpop.f32.mrb[0].mxu0
        %v426 = vpop.f32.mrb[0].mxu0
        %v427 = vadd.f32 %v332, %v426
        %v428 = vpop.f32.mrb[0].mxu0
        %429 = vmatprep.mubr.bf16.mxu0 0
        %430 = vmatmul.mubr.bf16.gmra.mrb[0].mxu0 %v354
        %v431 = vpop.f32.mrb[0].mxu0
        %v432 = vadd.f32 %v332, %v431
        %v433 = vpop.f32.mrb[0].mxu0
        %v434 = vpop.f32.mrb[0].mxu0
        %v435 = vadd.f32 %v332, %v434
        %v436 = vpop.f32.mrb[0].mxu0
        %437 = vmatprep.mubr.bf16.mxu0 0
        %438 = vmatmul.mubr.bf16.gmra.mrb[0].mxu0 %v357
        %v439 = vpop.f32.mrb[0].mxu0
        %v440 = vadd.f32 %v332, %v439
        %v441 = vpop.f32.mrb[0].mxu0
        %v442 = vpop.f32.mrb[0].mxu0
        %v443 = vadd.f32 %v332, %v442
        %v444 = vpop.f32.mrb[0].mxu0
        %445 = vmatprep.mubr.bf16.mxu0 0
        %446 = vmatmul.mubr.bf16.gmra.mrb[0].mxu0 %v360
        %v447 = vpop.f32.mrb[0].mxu0
        %v448 = vadd.f32 %v332, %v447
        %v449 = vpop.f32.mrb[0].mxu0
        %v450 = vpop.f32.mrb[0].mxu0
        %v451 = vadd.f32 %v332, %v450
        %v452 = vpop.f32.mrb[0].mxu0
        %453 = vmatprep.mubr.bf16.mxu0 0
        %454 = vmatmul.mubr.bf16.gmra.mrb[0].mxu0 %v363
        %v455 = vpop.f32.mrb[0].mxu0
        %v456 = vadd.f32 %v332, %v455
        %v457 = vpop.f32.mrb[0].mxu0
        %v458 = vpop.f32.mrb[0].mxu0
        %v459 = vadd.f32 %v332, %v458
        %v460 = vpop.f32.mrb[0].mxu0
        %461 = vdwg.mxu0
        %v462 = vmax.f32 %v400, 0.0
        %v463 = vmax.f32 %v403, 0.0
        %v464 = vmax.f32 %v408, 0.0
        %v465 = vmax.f32 %v411, 0.0
        %v466 = vmax.f32 %v416, 0.0
        %v467 = vmax.f32 %v419, 0.0
        %v468 = vmax.f32 %v424, 0.0
        %v469 = vmax.f32 %v427, 0.0
        %v470 = vmax.f32 %v432, 0.0
        %v471 = vmax.f32 %v435, 0.0
        %v472 = vmax.f32 %v440, 0.0
        %v473 = vmax.f32 %v443, 0.0
        %v474 = vmax.f32 %v448, 0.0
        %v475 = vmax.f32 %v451, 0.0
        %v476 = vmax.f32 %v456, 0.0
        %v477 = vmax.f32 %v459, 0.0
        %v478 = vpack.c.bf16 %v463, %v462
        %v479 = vpack.c.bf16 %v465, %v464
        %v480 = vpack.c.bf16 %v467, %v466
        %v481 = vpack.c.bf16 %v469, %v468
        %v482 = vpack.c.bf16 %v471, %v470
        %v483 = vpack.c.bf16 %v473, %v472
        %v484 = vpack.c.bf16 %v475, %v474
        %v485 = vpack.c.bf16 %v477, %v476
        %v486 = vld [vmem:[%s3] sm:$0xf]
        %v487 = vld [vmem:[%s3 + $0x4] sm:$0xf]
        %v488 = vld [vmem:[%s3 + $0x8] sm:$0xf]
        %v489 = vld [vmem:[%s3 + $0xc] sm:$0xf]
        %v490 = vld [vmem:[%s3 + $0x10] sm:$0xf]
        %v491 = vld [vmem:[%s3 + $0x14] sm:$0xf]
        %v492 = vld [vmem:[%s3 + $0x18] sm:$0xf]
        %v493 = vld [vmem:[%s3 + $0x1c] sm:$0xf]
        %v494 = vld [vmem:[%s4] sm:$0x1]
        %v496 = vlaneseq
        %v497 = vshrl.u32 %v496, 7
        %v498 = vsub.s32 0, %v497
        %v499 = vrot.slane %v494, %v498
        %v509 = vunpack.c.l.b16 %v486
        %v510 = vunpack.c.l.b16 %v487
        %v511 = vunpack.c.l.b16 %v488
        %v512 = vunpack.c.l.b16 %v489
        %v513 = vunpack.c.l.b16 %v490
        %v514 = vunpack.c.l.b16 %v491
        %v515 = vunpack.c.l.b16 %v492
        %v516 = vunpack.c.l.b16 %v493
        %v517 = vpack.c.b16 %v510, %v509
        %v518 = vpack.c.b16 %v512, %v511
        %v519 = vpack.c.b16 %v514, %v513
        %v520 = vpack.c.b16 %v516, %v515
        %vm525 = vcmask 523264
        %v527 = vsel %vm525, %v478, 0
        %v530 = vsel %vm525, %v479, 0
        %v533 = vsel %vm525, %v480, 0
        %v536 = vsel %vm525, %v481, 0
        %v539 = vsel %vm525, %v482, 0
        %v542 = vsel %vm525, %v483, 0
        %v545 = vsel %vm525, %v484, 0
        %v548 = vsel %vm525, %v485, 0
        %550 = vmatprep.subr.bf16.mxu0 0
        %551 = vmatpush1.bf16.msra.mxu0 %v517
        %552 = vmatprep.subr.bf16.mxu0 0
        %553 = vmatpush1.bf16.msra.mxu0 %v518
        %554 = vmatprep.subr.bf16.mxu0 0
        %555 = vmatpush1.bf16.msra.mxu0 %v519
        %556 = vmatprep.subr.bf16.mxu0 0
        %557 = vmatpush1.bf16.msra.mxu0 %v520
        %558 = vmatprep.subr.bf16.mxu0 0
        %559 = vmatpush1.bf16.msra.mxu0 0
        %560 = vmatprep.subr.bf16.mxu0 0
        %561 = vmatpush1.bf16.msra.mxu0 0
        %562 = vmatprep.subr.bf16.mxu0 0
        %563 = vmatpush1.bf16.msra.mxu0 0
        %564 = vmatprep.subr.bf16.mxu0 0
        %565 = vmatpush1.bf16.msra.mxu0 0
        %566 = vmatprep.subr.bf16.mxu0 0
        %567 = vmatpush1.bf16.msra.mxu0 0
        %568 = vmatprep.subr.bf16.mxu0 0
        %569 = vmatpush1.bf16.msra.mxu0 0
        %570 = vmatprep.subr.bf16.mxu0 0
        %571 = vmatpush1.bf16.msra.mxu0 0
        %572 = vmatprep.subr.bf16.mxu0 0
        %573 = vmatpush1.bf16.msra.mxu0 0
        %574 = vmatprep.subr.bf16.mxu0 0
        %575 = vmatpush1.bf16.msra.mxu0 0
        %576 = vmatprep.subr.bf16.mxu0 0
        %577 = vmatpush1.bf16.msra.mxu0 0
        %578 = vmatprep.subr.bf16.mxu0 0
        %579 = vmatpush1.bf16.msra.mxu0 0
        %580 = vmatprep.subr.bf16.mxu0 0
        %581 = vmatpush1.bf16.msra.mxu0 0
        %582 = vmatprep.mubr.bf16.mxu0 0
        %583 = vmatmul.mubr.bf16.gmra.mrb[0].mxu0 %v527
        %v584 = vpop.f32.mrb[0].mxu0
        %v585 = vadd.f32 %v499, %v584
        %v586 = vpop.f32.mrb[0].mxu0
        %v587 = vpop.f32.mrb[0].mxu0
        %v588 = vadd.f32 %v499, %v587
        %v589 = vpop.f32.mrb[0].mxu0
        %590 = vmatprep.mubr.bf16.mxu0 0
        %591 = vmatmul.mubr.bf16.gmra.mrb[0].mxu0 %v530
        %v592 = vpop.f32.mrb[0].mxu0
        %v593 = vadd.f32 %v499, %v592
        %v594 = vpop.f32.mrb[0].mxu0
        %v595 = vpop.f32.mrb[0].mxu0
        %v596 = vadd.f32 %v499, %v595
        %v597 = vpop.f32.mrb[0].mxu0
        %598 = vmatprep.mubr.bf16.mxu0 0
        %599 = vmatmul.mubr.bf16.gmra.mrb[0].mxu0 %v533
        %v600 = vpop.f32.mrb[0].mxu0
        %v601 = vadd.f32 %v499, %v600
        %v602 = vpop.f32.mrb[0].mxu0
        %v603 = vpop.f32.mrb[0].mxu0
        %v604 = vadd.f32 %v499, %v603
        %v605 = vpop.f32.mrb[0].mxu0
        %606 = vmatprep.mubr.bf16.mxu0 0
        %607 = vmatmul.mubr.bf16.gmra.mrb[0].mxu0 %v536
        %v608 = vpop.f32.mrb[0].mxu0
        %v609 = vadd.f32 %v499, %v608
        %v610 = vpop.f32.mrb[0].mxu0
        %v611 = vpop.f32.mrb[0].mxu0
        %v612 = vadd.f32 %v499, %v611
        %v613 = vpop.f32.mrb[0].mxu0
        %614 = vmatprep.mubr.bf16.mxu0 0
        %615 = vmatmul.mubr.bf16.gmra.mrb[0].mxu0 %v539
        %v616 = vpop.f32.mrb[0].mxu0
        %v617 = vadd.f32 %v499, %v616
        %v618 = vpop.f32.mrb[0].mxu0
        %v619 = vpop.f32.mrb[0].mxu0
        %v620 = vadd.f32 %v499, %v619
        %v621 = vpop.f32.mrb[0].mxu0
        %622 = vmatprep.mubr.bf16.mxu0 0
        %623 = vmatmul.mubr.bf16.gmra.mrb[0].mxu0 %v542
        %v624 = vpop.f32.mrb[0].mxu0
        %v625 = vadd.f32 %v499, %v624
        %v626 = vpop.f32.mrb[0].mxu0
        %v627 = vpop.f32.mrb[0].mxu0
        %v628 = vadd.f32 %v499, %v627
        %v629 = vpop.f32.mrb[0].mxu0
        %630 = vmatprep.mubr.bf16.mxu0 0
        %631 = vmatmul.mubr.bf16.gmra.mrb[0].mxu0 %v545
        %v632 = vpop.f32.mrb[0].mxu0
        %v633 = vadd.f32 %v499, %v632
        %v634 = vpop.f32.mrb[0].mxu0
        %v635 = vpop.f32.mrb[0].mxu0
        %v636 = vadd.f32 %v499, %v635
        %v637 = vpop.f32.mrb[0].mxu0
        %638 = vmatprep.mubr.bf16.mxu0 0
        %639 = vmatmul.mubr.bf16.gmra.mrb[0].mxu0 %v548
        %v640 = vpop.f32.mrb[0].mxu0
        %v641 = vadd.f32 %v499, %v640
        %v642 = vpop.f32.mrb[0].mxu0
        %v643 = vpop.f32.mrb[0].mxu0
        %v644 = vadd.f32 %v499, %v643
        %v645 = vpop.f32.mrb[0].mxu0
        %646 = vdwg.mxu0
        %v647 = vmax.f32 %v585, 0.0
        %v648 = vmax.f32 %v588, 0.0
        %v649 = vmax.f32 %v593, 0.0
        %v650 = vmax.f32 %v596, 0.0
        %v651 = vmax.f32 %v601, 0.0
        %v652 = vmax.f32 %v604, 0.0
        %v653 = vmax.f32 %v609, 0.0
        %v654 = vmax.f32 %v612, 0.0
        %v655 = vmax.f32 %v617, 0.0
        %v656 = vmax.f32 %v620, 0.0
        %v657 = vmax.f32 %v625, 0.0
        %v658 = vmax.f32 %v628, 0.0
        %v659 = vmax.f32 %v633, 0.0
        %v660 = vmax.f32 %v636, 0.0
        %v661 = vmax.f32 %v641, 0.0
        %v662 = vmax.f32 %v644, 0.0
        %v663 = vpack.c.bf16 %v648, %v647
        %v664 = vpack.c.bf16 %v650, %v649
        %v665 = vpack.c.bf16 %v652, %v651
        %v666 = vpack.c.bf16 %v654, %v653
        %v667 = vpack.c.bf16 %v656, %v655
        %v668 = vpack.c.bf16 %v658, %v657
        %v669 = vpack.c.bf16 %v660, %v659
        %v670 = vpack.c.bf16 %v662, %v661
        %v671 = vld [vmem:[%s5] sm:$0xf]
        %v672 = vld [vmem:[%s5 + $0x4] sm:$0xf]
        %v673 = vld [vmem:[%s5 + $0x8] sm:$0xf]
        %v674 = vld [vmem:[%s5 + $0xc] sm:$0xf]
        %v675 = vld [vmem:[%s6] sm:$0x1]
        %v677 = vlaneseq
        %v678 = vshrl.u32 %v677, 7
        %v679 = vsub.s32 0, %v678
        %v680 = vrot.slane %v675, %v679
        %v686 = vunpack.c.l.b16 %v671
        %v687 = vunpack.c.l.b16 %v672
        %v688 = vunpack.c.l.b16 %v673
        %v689 = vunpack.c.l.b16 %v674
        %v690 = vpack.c.b16 %v687, %v686
        %v691 = vpack.c.b16 %v689, %v688
        %vm694 = vcmask 261120
        %v696 = vsel %vm694, %v663, 0
        %v699 = vsel %vm694, %v664, 0
        %v702 = vsel %vm694, %v665, 0
        %v705 = vsel %vm694, %v666, 0
        %v708 = vsel %vm694, %v667, 0
        %v711 = vsel %vm694, %v668, 0
        %v714 = vsel %vm694, %v669, 0
        %v717 = vsel %vm694, %v670, 0
        %719 = vmatprep.subr.bf16.mxu0 0
        %720 = vmatpush1.bf16.msra.mxu0 %v690
        %721 = vmatprep.subr.bf16.mxu0 0
        %722 = vmatpush1.bf16.msra.mxu0 %v691
        %723 = vmatprep.subr.bf16.mxu0 0
        %724 = vmatpush1.bf16.msra.mxu0 0
        %725 = vmatprep.subr.bf16.mxu0 0
        %726 = vmatpush1.bf16.msra.mxu0 0
        %727 = vmatprep.subr.bf16.mxu0 0
        %728 = vmatpush1.bf16.msra.mxu0 0
        %729 = vmatprep.subr.bf16.mxu0 0
        %730 = vmatpush1.bf16.msra.mxu0 0
        %731 = vmatprep.subr.bf16.mxu0 0
        %732 = vmatpush1.bf16.msra.mxu0 0
        %733 = vmatprep.subr.bf16.mxu0 0
        %734 = vmatpush1.bf16.msra.mxu0 0
        %735 = vmatprep.subr.bf16.mxu0 0
        %736 = vmatpush1.bf16.msra.mxu0 0
        %737 = vmatprep.subr.bf16.mxu0 0
        %738 = vmatpush1.bf16.msra.mxu0 0
        %739 = vmatprep.subr.bf16.mxu0 0
        %740 = vmatpush1.bf16.msra.mxu0 0
        %741 = vmatprep.subr.bf16.mxu0 0
        %742 = vmatpush1.bf16.msra.mxu0 0
        %743 = vmatprep.subr.bf16.mxu0 0
        %744 = vmatpush1.bf16.msra.mxu0 0
        %745 = vmatprep.subr.bf16.mxu0 0
        %746 = vmatpush1.bf16.msra.mxu0 0
        %747 = vmatprep.subr.bf16.mxu0 0
        %748 = vmatpush1.bf16.msra.mxu0 0
        %749 = vmatprep.subr.bf16.mxu0 0
        %750 = vmatpush1.bf16.msra.mxu0 0
        %751 = vmatprep.mubr.bf16.mxu0 0
        %752 = vmatmul.mubr.bf16.gmra.mrb[0].mxu0 %v696
        %v753 = vpop.f32.mrb[0].mxu0
        %v754 = vadd.f32 %v680, %v753
        %v755 = vpop.f32.mrb[0].mxu0
        %v756 = vpop.f32.mrb[0].mxu0
        %v757 = vadd.f32 %v680, %v756
        %v758 = vpop.f32.mrb[0].mxu0
        %759 = vmatprep.mubr.bf16.mxu0 0
        %760 = vmatmul.mubr.bf16.gmra.mrb[0].mxu0 %v699
        %v761 = vpop.f32.mrb[0].mxu0
        %v762 = vadd.f32 %v680, %v761
        %v763 = vpop.f32.mrb[0].mxu0
        %v764 = vpop.f32.mrb[0].mxu0
        %v765 = vadd.f32 %v680, %v764
        %v766 = vpop.f32.mrb[0].mxu0
        %767 = vmatprep.mubr.bf16.mxu0 0
        %768 = vmatmul.mubr.bf16.gmra.mrb[0].mxu0 %v702
        %v769 = vpop.f32.mrb[0].mxu0
        %v770 = vadd.f32 %v680, %v769
        %v771 = vpop.f32.mrb[0].mxu0
        %v772 = vpop.f32.mrb[0].mxu0
        %v773 = vadd.f32 %v680, %v772
        %v774 = vpop.f32.mrb[0].mxu0
        %775 = vmatprep.mubr.bf16.mxu0 0
        %776 = vmatmul.mubr.bf16.gmra.mrb[0].mxu0 %v705
        %v777 = vpop.f32.mrb[0].mxu0
        %v778 = vadd.f32 %v680, %v777
        %v779 = vpop.f32.mrb[0].mxu0
        %v780 = vpop.f32.mrb[0].mxu0
        %v781 = vadd.f32 %v680, %v780
        %v782 = vpop.f32.mrb[0].mxu0
        %783 = vmatprep.mubr.bf16.mxu0 0
        %784 = vmatmul.mubr.bf16.gmra.mrb[0].mxu0 %v708
        %v785 = vpop.f32.mrb[0].mxu0
        %v786 = vadd.f32 %v680, %v785
        %v787 = vpop.f32.mrb[0].mxu0
        %v788 = vpop.f32.mrb[0].mxu0
        %v789 = vadd.f32 %v680, %v788
        %v790 = vpop.f32.mrb[0].mxu0
        %791 = vmatprep.mubr.bf16.mxu0 0
        %792 = vmatmul.mubr.bf16.gmra.mrb[0].mxu0 %v711
        %v793 = vpop.f32.mrb[0].mxu0
        %v794 = vadd.f32 %v680, %v793
        %v795 = vpop.f32.mrb[0].mxu0
        %v796 = vpop.f32.mrb[0].mxu0
        %v797 = vadd.f32 %v680, %v796
        %v798 = vpop.f32.mrb[0].mxu0
        %799 = vmatprep.mubr.bf16.mxu0 0
        %800 = vmatmul.mubr.bf16.gmra.mrb[0].mxu0 %v714
        %v801 = vpop.f32.mrb[0].mxu0
        %v802 = vadd.f32 %v680, %v801
        %v803 = vpop.f32.mrb[0].mxu0
        %v804 = vpop.f32.mrb[0].mxu0
        %v805 = vadd.f32 %v680, %v804
        %v806 = vpop.f32.mrb[0].mxu0
        %807 = vmatprep.mubr.bf16.mxu0 0
        %808 = vmatmul.mubr.bf16.gmra.mrb[0].mxu0 %v717
        %v809 = vpop.f32.mrb[0].mxu0
        %v810 = vadd.f32 %v680, %v809
        %v811 = vpop.f32.mrb[0].mxu0
        %v812 = vpop.f32.mrb[0].mxu0
        %v813 = vadd.f32 %v680, %v812
        %v814 = vpop.f32.mrb[0].mxu0
        %815 = vdwg.mxu0
        %vm816 = vcmask 64512
        %817 = vst.msk [vmem:[%s280] sm:$0xff] %vm816, %v754
        %818 = vst.msk [vmem:[%s280 + $0x8] sm:$0xff] %vm816, %v757
        %819 = vst.msk [vmem:[%s280 + $0x10] sm:$0xff] %vm816, %v762
        %820 = vst.msk [vmem:[%s280 + $0x18] sm:$0xff] %vm816, %v765
        %821 = vst.msk [vmem:[%s280 + $0x20] sm:$0xff] %vm816, %v770
        %822 = vst.msk [vmem:[%s280 + $0x28] sm:$0xff] %vm816, %v773
        %823 = vst.msk [vmem:[%s280 + $0x30] sm:$0xff] %vm816, %v778
        %824 = vst.msk [vmem:[%s280 + $0x38] sm:$0xff] %vm816, %v781
        %825 = vst.msk [vmem:[%s280 + $0x40] sm:$0xff] %vm816, %v786
        %826 = vst.msk [vmem:[%s280 + $0x48] sm:$0xff] %vm816, %v789
        %827 = vst.msk [vmem:[%s280 + $0x50] sm:$0xff] %vm816, %v794
        %828 = vst.msk [vmem:[%s280 + $0x58] sm:$0xff] %vm816, %v797
        %829 = vst.msk [vmem:[%s280 + $0x60] sm:$0xff] %vm816, %v802
        %830 = vst.msk [vmem:[%s280 + $0x68] sm:$0xff] %vm816, %v805
        %831 = vst.msk [vmem:[%s280 + $0x70] sm:$0xff] %vm816, %v810
        %832 = vst.msk [vmem:[%s280 + $0x78] sm:$0xff] %vm816, %v813
        %s833 = scalar_lea.vmem %s289, 128
        %v834 = vld [vmem:[%s833] sm:$0xff]
        %v835 = vld [vmem:[%s833 + $0x8] sm:$0xff]
        %v836 = vld [vmem:[%s833 + $0x10] sm:$0xff]
        %v837 = vld [vmem:[%s833 + $0x18] sm:$0xff]
        %v838 = vld [vmem:[%s833 + $0x20] sm:$0xff]
        %v839 = vld [vmem:[%s833 + $0x28] sm:$0xff]
        %v840 = vld [vmem:[%s833 + $0x30] sm:$0xff]
        %v841 = vld [vmem:[%s833 + $0x38] sm:$0xff]
        %v842 = vld [vmem:[%s833 + $0x40] sm:$0xff]
        %v843 = vld [vmem:[%s833 + $0x48] sm:$0xff]
        %v844 = vld [vmem:[%s833 + $0x50] sm:$0xff]
        %v845 = vld [vmem:[%s833 + $0x58] sm:$0xff]
        %v846 = vld [vmem:[%s833 + $0x60] sm:$0xff]
        %v847 = vld [vmem:[%s833 + $0x68] sm:$0xff]
        %v848 = vld [vmem:[%s833 + $0x70] sm:$0xff]
        %v849 = vld [vmem:[%s833 + $0x78] sm:$0xff]
        %v850 = vpack.c.bf16 %v835, %v834
        %v851 = vpack.c.bf16 %v837, %v836
        %v852 = vpack.c.bf16 %v839, %v838
        %v853 = vpack.c.bf16 %v841, %v840
        %v854 = vpack.c.bf16 %v843, %v842
        %v855 = vpack.c.bf16 %v845, %v844
        %v856 = vpack.c.bf16 %v847, %v846
        %v857 = vpack.c.bf16 %v849, %v848
        %v858 = vld [vmem:[%s1] sm:$0xf]
        %v859 = vld [vmem:[%s1 + $0x4] sm:$0xf]
        %v860 = vld [vmem:[%s2] sm:$0x1]
        %v862 = vlaneseq
        %v863 = vshrl.u32 %v862, 7
        %v864 = vsub.s32 0, %v863
        %v865 = vrot.slane %v860, %v864
        %v869 = vunpack.c.l.b16 %v858
        %v870 = vunpack.c.l.b16 %v859
        %v871 = vpack.c.b16 %v870, %v869
        %v874 = vsel %vm340, %v850, 0
        %v877 = vsel %vm340, %v851, 0
        %v880 = vsel %vm340, %v852, 0
        %v883 = vsel %vm340, %v853, 0
        %v886 = vsel %vm340, %v854, 0
        %v889 = vsel %vm340, %v855, 0
        %v892 = vsel %vm340, %v856, 0
        %v895 = vsel %vm340, %v857, 0
        %897 = vmatprep.subr.bf16.mxu0 0
        %898 = vmatpush1.bf16.msra.mxu0 %v871
        %899 = vmatprep.subr.bf16.mxu0 0
        %900 = vmatpush1.bf16.msra.mxu0 0
        %901 = vmatprep.subr.bf16.mxu0 0
        %902 = vmatpush1.bf16.msra.mxu0 0
        %903 = vmatprep.subr.bf16.mxu0 0
        %904 = vmatpush1.bf16.msra.mxu0 0
        %905 = vmatprep.subr.bf16.mxu0 0
        %906 = vmatpush1.bf16.msra.mxu0 0
        %907 = vmatprep.subr.bf16.mxu0 0
        %908 = vmatpush1.bf16.msra.mxu0 0
        %909 = vmatprep.subr.bf16.mxu0 0
        %910 = vmatpush1.bf16.msra.mxu0 0
        %911 = vmatprep.subr.bf16.mxu0 0
        %912 = vmatpush1.bf16.msra.mxu0 0
        %913 = vmatprep.subr.bf16.mxu0 0
        %914 = vmatpush1.bf16.msra.mxu0 0
        %915 = vmatprep.subr.bf16.mxu0 0
        %916 = vmatpush1.bf16.msra.mxu0 0
        %917 = vmatprep.subr.bf16.mxu0 0
        %918 = vmatpush1.bf16.msra.mxu0 0
        %919 = vmatprep.subr.bf16.mxu0 0
        %920 = vmatpush1.bf16.msra.mxu0 0
        %921 = vmatprep.subr.bf16.mxu0 0
        %922 = vmatpush1.bf16.msra.mxu0 0
        %923 = vmatprep.subr.bf16.mxu0 0
        %924 = vmatpush1.bf16.msra.mxu0 0
        %925 = vmatprep.subr.bf16.mxu0 0
        %926 = vmatpush1.bf16.msra.mxu0 0
        %927 = vmatprep.subr.bf16.mxu0 0
        %928 = vmatpush1.bf16.msra.mxu0 0
        %929 = vmatprep.mubr.bf16.mxu0 0
        %930 = vmatmul.mubr.bf16.gmra.mrb[0].mxu0 %v874
        %v931 = vpop.f32.mrb[0].mxu0
        %v932 = vadd.f32 %v865, %v931
        %v933 = vpop.f32.mrb[0].mxu0
        %v934 = vpop.f32.mrb[0].mxu0
        %v935 = vadd.f32 %v865, %v934
        %v936 = vpop.f32.mrb[0].mxu0
        %937 = vmatprep.mubr.bf16.mxu0 0
        %938 = vmatmul.mubr.bf16.gmra.mrb[0].mxu0 %v877
        %v939 = vpop.f32.mrb[0].mxu0
        %v940 = vadd.f32 %v865, %v939
        %v941 = vpop.f32.mrb[0].mxu0
        %v942 = vpop.f32.mrb[0].mxu0
        %v943 = vadd.f32 %v865, %v942
        %v944 = vpop.f32.mrb[0].mxu0
        %945 = vmatprep.mubr.bf16.mxu0 0
        %946 = vmatmul.mubr.bf16.gmra.mrb[0].mxu0 %v880
        %v947 = vpop.f32.mrb[0].mxu0
        %v948 = vadd.f32 %v865, %v947
        %v949 = vpop.f32.mrb[0].mxu0
        %v950 = vpop.f32.mrb[0].mxu0
        %v951 = vadd.f32 %v865, %v950
        %v952 = vpop.f32.mrb[0].mxu0
        %953 = vmatprep.mubr.bf16.mxu0 0
        %954 = vmatmul.mubr.bf16.gmra.mrb[0].mxu0 %v883
        %v955 = vpop.f32.mrb[0].mxu0
        %v956 = vadd.f32 %v865, %v955
        %v957 = vpop.f32.mrb[0].mxu0
        %v958 = vpop.f32.mrb[0].mxu0
        %v959 = vadd.f32 %v865, %v958
        %v960 = vpop.f32.mrb[0].mxu0
        %961 = vmatprep.mubr.bf16.mxu0 0
        %962 = vmatmul.mubr.bf16.gmra.mrb[0].mxu0 %v886
        %v963 = vpop.f32.mrb[0].mxu0
        %v964 = vadd.f32 %v865, %v963
        %v965 = vpop.f32.mrb[0].mxu0
        %v966 = vpop.f32.mrb[0].mxu0
        %v967 = vadd.f32 %v865, %v966
        %v968 = vpop.f32.mrb[0].mxu0
        %969 = vmatprep.mubr.bf16.mxu0 0
        %970 = vmatmul.mubr.bf16.gmra.mrb[0].mxu0 %v889
        %v971 = vpop.f32.mrb[0].mxu0
        %v972 = vadd.f32 %v865, %v971
        %v973 = vpop.f32.mrb[0].mxu0
        %v974 = vpop.f32.mrb[0].mxu0
        %v975 = vadd.f32 %v865, %v974
        %v976 = vpop.f32.mrb[0].mxu0
        %977 = vmatprep.mubr.bf16.mxu0 0
        %978 = vmatmul.mubr.bf16.gmra.mrb[0].mxu0 %v892
        %v979 = vpop.f32.mrb[0].mxu0
        %v980 = vadd.f32 %v865, %v979
        %v981 = vpop.f32.mrb[0].mxu0
        %v982 = vpop.f32.mrb[0].mxu0
        %v983 = vadd.f32 %v865, %v982
        %v984 = vpop.f32.mrb[0].mxu0
        %985 = vmatprep.mubr.bf16.mxu0 0
        %986 = vmatmul.mubr.bf16.gmra.mrb[0].mxu0 %v895
        %v987 = vpop.f32.mrb[0].mxu0
        %v988 = vadd.f32 %v865, %v987
        %v989 = vpop.f32.mrb[0].mxu0
        %v990 = vpop.f32.mrb[0].mxu0
        %v991 = vadd.f32 %v865, %v990
        %v992 = vpop.f32.mrb[0].mxu0
        %993 = vdwg.mxu0
        %v994 = vmax.f32 %v932, 0.0
        %v995 = vmax.f32 %v935, 0.0
        %v996 = vmax.f32 %v940, 0.0
        %v997 = vmax.f32 %v943, 0.0
        %v998 = vmax.f32 %v948, 0.0
        %v999 = vmax.f32 %v951, 0.0
        %v1000 = vmax.f32 %v956, 0.0
        %v1001 = vmax.f32 %v959, 0.0
        %v1002 = vmax.f32 %v964, 0.0
        %v1003 = vmax.f32 %v967, 0.0
        %v1004 = vmax.f32 %v972, 0.0
        %v1005 = vmax.f32 %v975, 0.0
        %v1006 = vmax.f32 %v980, 0.0
        %v1007 = vmax.f32 %v983, 0.0
        %v1008 = vmax.f32 %v988, 0.0
        %v1009 = vmax.f32 %v991, 0.0
        %v1010 = vpack.c.bf16 %v995, %v994
        %v1011 = vpack.c.bf16 %v997, %v996
        %v1012 = vpack.c.bf16 %v999, %v998
        %v1013 = vpack.c.bf16 %v1001, %v1000
        %v1014 = vpack.c.bf16 %v1003, %v1002
        %v1015 = vpack.c.bf16 %v1005, %v1004
        %v1016 = vpack.c.bf16 %v1007, %v1006
        %v1017 = vpack.c.bf16 %v1009, %v1008
        %v1018 = vld [vmem:[%s3] sm:$0xf]
        %v1019 = vld [vmem:[%s3 + $0x4] sm:$0xf]
        %v1020 = vld [vmem:[%s3 + $0x8] sm:$0xf]
        %v1021 = vld [vmem:[%s3 + $0xc] sm:$0xf]
        %v1022 = vld [vmem:[%s3 + $0x10] sm:$0xf]
        %v1023 = vld [vmem:[%s3 + $0x14] sm:$0xf]
        %v1024 = vld [vmem:[%s3 + $0x18] sm:$0xf]
        %v1025 = vld [vmem:[%s3 + $0x1c] sm:$0xf]
        %v1026 = vld [vmem:[%s4] sm:$0x1]
        %v1028 = vlaneseq
        %v1029 = vshrl.u32 %v1028, 7
        %v1030 = vsub.s32 0, %v1029
        %v1031 = vrot.slane %v1026, %v1030
        %v1041 = vunpack.c.l.b16 %v1018
        %v1042 = vunpack.c.l.b16 %v1019
        %v1043 = vunpack.c.l.b16 %v1020
        %v1044 = vunpack.c.l.b16 %v1021
        %v1045 = vunpack.c.l.b16 %v1022
        %v1046 = vunpack.c.l.b16 %v1023
        %v1047 = vunpack.c.l.b16 %v1024
        %v1048 = vunpack.c.l.b16 %v1025
        %v1049 = vpack.c.b16 %v1042, %v1041
        %v1050 = vpack.c.b16 %v1044, %v1043
        %v1051 = vpack.c.b16 %v1046, %v1045
        %v1052 = vpack.c.b16 %v1048, %v1047
        %v1058 = vsel %vm525, %v1010, 0
        %v1061 = vsel %vm525, %v1011, 0
        %v1064 = vsel %vm525, %v1012, 0
        %v1067 = vsel %vm525, %v1013, 0
        %v1070 = vsel %vm525, %v1014, 0
        %v1073 = vsel %vm525, %v1015, 0
        %v1076 = vsel %vm525, %v1016, 0
        %v1079 = vsel %vm525, %v1017, 0
        %1081 = vmatprep.subr.bf16.mxu0 0
        %1082 = vmatpush1.bf16.msra.mxu0 %v1049
        %1083 = vmatprep.subr.bf16.mxu0 0
        %1084 = vmatpush1.bf16.msra.mxu0 %v1050
        %1085 = vmatprep.subr.bf16.mxu0 0
        %1086 = vmatpush1.bf16.msra.mxu0 %v1051
        %1087 = vmatprep.subr.bf16.mxu0 0
        %1088 = vmatpush1.bf16.msra.mxu0 %v1052
        %1089 = vmatprep.subr.bf16.mxu0 0
        %1090 = vmatpush1.bf16.msra.mxu0 0
        %1091 = vmatprep.subr.bf16.mxu0 0
        %1092 = vmatpush1.bf16.msra.mxu0 0
        %1093 = vmatprep.subr.bf16.mxu0 0
        %1094 = vmatpush1.bf16.msra.mxu0 0
        %1095 = vmatprep.subr.bf16.mxu0 0
        %1096 = vmatpush1.bf16.msra.mxu0 0
        %1097 = vmatprep.subr.bf16.mxu0 0
        %1098 = vmatpush1.bf16.msra.mxu0 0
        %1099 = vmatprep.subr.bf16.mxu0 0
        %1100 = vmatpush1.bf16.msra.mxu0 0
        %1101 = vmatprep.subr.bf16.mxu0 0
        %1102 = vmatpush1.bf16.msra.mxu0 0
        %1103 = vmatprep.subr.bf16.mxu0 0
        %1104 = vmatpush1.bf16.msra.mxu0 0
        %1105 = vmatprep.subr.bf16.mxu0 0
        %1106 = vmatpush1.bf16.msra.mxu0 0
        %1107 = vmatprep.subr.bf16.mxu0 0
        %1108 = vmatpush1.bf16.msra.mxu0 0
        %1109 = vmatprep.subr.bf16.mxu0 0
        %1110 = vmatpush1.bf16.msra.mxu0 0
        %1111 = vmatprep.subr.bf16.mxu0 0
        %1112 = vmatpush1.bf16.msra.mxu0 0
        %1113 = vmatprep.mubr.bf16.mxu0 0
        %1114 = vmatmul.mubr.bf16.gmra.mrb[0].mxu0 %v1058
        %v1115 = vpop.f32.mrb[0].mxu0
        %v1116 = vadd.f32 %v1031, %v1115
        %v1117 = vpop.f32.mrb[0].mxu0
        %v1118 = vpop.f32.mrb[0].mxu0
        %v1119 = vadd.f32 %v1031, %v1118
        %v1120 = vpop.f32.mrb[0].mxu0
        %1121 = vmatprep.mubr.bf16.mxu0 0
        %1122 = vmatmul.mubr.bf16.gmra.mrb[0].mxu0 %v1061
        %v1123 = vpop.f32.mrb[0].mxu0
        %v1124 = vadd.f32 %v1031, %v1123
        %v1125 = vpop.f32.mrb[0].mxu0
        %v1126 = vpop.f32.mrb[0].mxu0
        %v1127 = vadd.f32 %v1031, %v1126
        %v1128 = vpop.f32.mrb[0].mxu0
        %1129 = vmatprep.mubr.bf16.mxu0 0
        %1130 = vmatmul.mubr.bf16.gmra.mrb[0].mxu0 %v1064
        %v1131 = vpop.f32.mrb[0].mxu0
        %v1132 = vadd.f32 %v1031, %v1131
        %v1133 = vpop.f32.mrb[0].mxu0
        %v1134 = vpop.f32.mrb[0].mxu0
        %v1135 = vadd.f32 %v1031, %v1134
        %v1136 = vpop.f32.mrb[0].mxu0
        %1137 = vmatprep.mubr.bf16.mxu0 0
        %1138 = vmatmul.mubr.bf16.gmra.mrb[0].mxu0 %v1067
        %v1139 = vpop.f32.mrb[0].mxu0
        %v1140 = vadd.f32 %v1031, %v1139
        %v1141 = vpop.f32.mrb[0].mxu0
        %v1142 = vpop.f32.mrb[0].mxu0
        %v1143 = vadd.f32 %v1031, %v1142
        %v1144 = vpop.f32.mrb[0].mxu0
        %1145 = vmatprep.mubr.bf16.mxu0 0
        %1146 = vmatmul.mubr.bf16.gmra.mrb[0].mxu0 %v1070
        %v1147 = vpop.f32.mrb[0].mxu0
        %v1148 = vadd.f32 %v1031, %v1147
        %v1149 = vpop.f32.mrb[0].mxu0
        %v1150 = vpop.f32.mrb[0].mxu0
        %v1151 = vadd.f32 %v1031, %v1150
        %v1152 = vpop.f32.mrb[0].mxu0
        %1153 = vmatprep.mubr.bf16.mxu0 0
        %1154 = vmatmul.mubr.bf16.gmra.mrb[0].mxu0 %v1073
        %v1155 = vpop.f32.mrb[0].mxu0
        %v1156 = vadd.f32 %v1031, %v1155
        %v1157 = vpop.f32.mrb[0].mxu0
        %v1158 = vpop.f32.mrb[0].mxu0
        %v1159 = vadd.f32 %v1031, %v1158
        %v1160 = vpop.f32.mrb[0].mxu0
        %1161 = vmatprep.mubr.bf16.mxu0 0
        %1162 = vmatmul.mubr.bf16.gmra.mrb[0].mxu0 %v1076
        %v1163 = vpop.f32.mrb[0].mxu0
        %v1164 = vadd.f32 %v1031, %v1163
        %v1165 = vpop.f32.mrb[0].mxu0
        %v1166 = vpop.f32.mrb[0].mxu0
        %v1167 = vadd.f32 %v1031, %v1166
        %v1168 = vpop.f32.mrb[0].mxu0
        %1169 = vmatprep.mubr.bf16.mxu0 0
        %1170 = vmatmul.mubr.bf16.gmra.mrb[0].mxu0 %v1079
        %v1171 = vpop.f32.mrb[0].mxu0
        %v1172 = vadd.f32 %v1031, %v1171
        %v1173 = vpop.f32.mrb[0].mxu0
        %v1174 = vpop.f32.mrb[0].mxu0
        %v1175 = vadd.f32 %v1031, %v1174
        %v1176 = vpop.f32.mrb[0].mxu0
        %1177 = vdwg.mxu0
        %v1178 = vmax.f32 %v1116, 0.0
        %v1179 = vmax.f32 %v1119, 0.0
        %v1180 = vmax.f32 %v1124, 0.0
        %v1181 = vmax.f32 %v1127, 0.0
        %v1182 = vmax.f32 %v1132, 0.0
        %v1183 = vmax.f32 %v1135, 0.0
        %v1184 = vmax.f32 %v1140, 0.0
        %v1185 = vmax.f32 %v1143, 0.0
        %v1186 = vmax.f32 %v1148, 0.0
        %v1187 = vmax.f32 %v1151, 0.0
        %v1188 = vmax.f32 %v1156, 0.0
        %v1189 = vmax.f32 %v1159, 0.0
        %v1190 = vmax.f32 %v1164, 0.0
        %v1191 = vmax.f32 %v1167, 0.0
        %v1192 = vmax.f32 %v1172, 0.0
        %v1193 = vmax.f32 %v1175, 0.0
        %v1194 = vpack.c.bf16 %v1179, %v1178
        %v1195 = vpack.c.bf16 %v1181, %v1180
        %v1196 = vpack.c.bf16 %v1183, %v1182
        %v1197 = vpack.c.bf16 %v1185, %v1184
        %v1198 = vpack.c.bf16 %v1187, %v1186
        %v1199 = vpack.c.bf16 %v1189, %v1188
        %v1200 = vpack.c.bf16 %v1191, %v1190
        %v1201 = vpack.c.bf16 %v1193, %v1192
        %v1202 = vld [vmem:[%s5] sm:$0xf]
        %v1203 = vld [vmem:[%s5 + $0x4] sm:$0xf]
        %v1204 = vld [vmem:[%s5 + $0x8] sm:$0xf]
        %v1205 = vld [vmem:[%s5 + $0xc] sm:$0xf]
        %v1206 = vld [vmem:[%s6] sm:$0x1]
        %v1208 = vlaneseq
        %v1209 = vshrl.u32 %v1208, 7
        %v1210 = vsub.s32 0, %v1209
        %v1211 = vrot.slane %v1206, %v1210
        %v1217 = vunpack.c.l.b16 %v1202
        %v1218 = vunpack.c.l.b16 %v1203
        %v1219 = vunpack.c.l.b16 %v1204
        %v1220 = vunpack.c.l.b16 %v1205
        %v1221 = vpack.c.b16 %v1218, %v1217
        %v1222 = vpack.c.b16 %v1220, %v1219
        %v1226 = vsel %vm694, %v1194, 0
        %v1229 = vsel %vm694, %v1195, 0
        %v1232 = vsel %vm694, %v1196, 0
        %v1235 = vsel %vm694, %v1197, 0
        %v1238 = vsel %vm694, %v1198, 0
        %v1241 = vsel %vm694, %v1199, 0
        %v1244 = vsel %vm694, %v1200, 0
        %v1247 = vsel %vm694, %v1201, 0
        %1249 = vmatprep.subr.bf16.mxu0 0
        %1250 = vmatpush1.bf16.msra.mxu0 %v1221
        %1251 = vmatprep.subr.bf16.mxu0 0
        %1252 = vmatpush1.bf16.msra.mxu0 %v1222
        %1253 = vmatprep.subr.bf16.mxu0 0
        %1254 = vmatpush1.bf16.msra.mxu0 0
        %1255 = vmatprep.subr.bf16.mxu0 0
        %1256 = vmatpush1.bf16.msra.mxu0 0
        %1257 = vmatprep.subr.bf16.mxu0 0
        %1258 = vmatpush1.bf16.msra.mxu0 0
        %1259 = vmatprep.subr.bf16.mxu0 0
        %1260 = vmatpush1.bf16.msra.mxu0 0
        %1261 = vmatprep.subr.bf16.mxu0 0
        %1262 = vmatpush1.bf16.msra.mxu0 0
        %1263 = vmatprep.subr.bf16.mxu0 0
        %1264 = vmatpush1.bf16.msra.mxu0 0
        %1265 = vmatprep.subr.bf16.mxu0 0
        %1266 = vmatpush1.bf16.msra.mxu0 0
        %1267 = vmatprep.subr.bf16.mxu0 0
        %1268 = vmatpush1.bf16.msra.mxu0 0
        %1269 = vmatprep.subr.bf16.mxu0 0
        %1270 = vmatpush1.bf16.msra.mxu0 0
        %1271 = vmatprep.subr.bf16.mxu0 0
        %1272 = vmatpush1.bf16.msra.mxu0 0
        %1273 = vmatprep.subr.bf16.mxu0 0
        %1274 = vmatpush1.bf16.msra.mxu0 0
        %1275 = vmatprep.subr.bf16.mxu0 0
        %1276 = vmatpush1.bf16.msra.mxu0 0
        %1277 = vmatprep.subr.bf16.mxu0 0
        %1278 = vmatpush1.bf16.msra.mxu0 0
        %1279 = vmatprep.subr.bf16.mxu0 0
        %1280 = vmatpush1.bf16.msra.mxu0 0
        %1281 = vmatprep.mubr.bf16.mxu0 0
        %1282 = vmatmul.mubr.bf16.gmra.mrb[0].mxu0 %v1226
        %v1283 = vpop.f32.mrb[0].mxu0
        %v1284 = vadd.f32 %v1211, %v1283
        %v1285 = vpop.f32.mrb[0].mxu0
        %v1286 = vpop.f32.mrb[0].mxu0
        %v1287 = vadd.f32 %v1211, %v1286
        %v1288 = vpop.f32.mrb[0].mxu0
        %1289 = vmatprep.mubr.bf16.mxu0 0
        %1290 = vmatmul.mubr.bf16.gmra.mrb[0].mxu0 %v1229
        %v1291 = vpop.f32.mrb[0].mxu0
        %v1292 = vadd.f32 %v1211, %v1291
        %v1293 = vpop.f32.mrb[0].mxu0
        %v1294 = vpop.f32.mrb[0].mxu0
        %v1295 = vadd.f32 %v1211, %v1294
        %v1296 = vpop.f32.mrb[0].mxu0
        %1297 = vmatprep.mubr.bf16.mxu0 0
        %1298 = vmatmul.mubr.bf16.gmra.mrb[0].mxu0 %v1232
        %v1299 = vpop.f32.mrb[0].mxu0
        %v1300 = vadd.f32 %v1211, %v1299
        %v1301 = vpop.f32.mrb[0].mxu0
        %v1302 = vpop.f32.mrb[0].mxu0
        %v1303 = vadd.f32 %v1211, %v1302
        %v1304 = vpop.f32.mrb[0].mxu0
        %1305 = vmatprep.mubr.bf16.mxu0 0
        %1306 = vmatmul.mubr.bf16.gmra.mrb[0].mxu0 %v1235
        %v1307 = vpop.f32.mrb[0].mxu0
        %v1308 = vadd.f32 %v1211, %v1307
        %v1309 = vpop.f32.mrb[0].mxu0
        %v1310 = vpop.f32.mrb[0].mxu0
        %v1311 = vadd.f32 %v1211, %v1310
        %v1312 = vpop.f32.mrb[0].mxu0
        %1313 = vmatprep.mubr.bf16.mxu0 0
        %1314 = vmatmul.mubr.bf16.gmra.mrb[0].mxu0 %v1238
        %v1315 = vpop.f32.mrb[0].mxu0
        %v1316 = vadd.f32 %v1211, %v1315
        %v1317 = vpop.f32.mrb[0].mxu0
        %v1318 = vpop.f32.mrb[0].mxu0
        %v1319 = vadd.f32 %v1211, %v1318
        %v1320 = vpop.f32.mrb[0].mxu0
        %1321 = vmatprep.mubr.bf16.mxu0 0
        %1322 = vmatmul.mubr.bf16.gmra.mrb[0].mxu0 %v1241
        %v1323 = vpop.f32.mrb[0].mxu0
        %v1324 = vadd.f32 %v1211, %v1323
        %v1325 = vpop.f32.mrb[0].mxu0
        %v1326 = vpop.f32.mrb[0].mxu0
        %v1327 = vadd.f32 %v1211, %v1326
        %v1328 = vpop.f32.mrb[0].mxu0
        %1329 = vmatprep.mubr.bf16.mxu0 0
        %1330 = vmatmul.mubr.bf16.gmra.mrb[0].mxu0 %v1244
        %v1331 = vpop.f32.mrb[0].mxu0
        %v1332 = vadd.f32 %v1211, %v1331
        %v1333 = vpop.f32.mrb[0].mxu0
        %v1334 = vpop.f32.mrb[0].mxu0
        %v1335 = vadd.f32 %v1211, %v1334
        %v1336 = vpop.f32.mrb[0].mxu0
        %1337 = vmatprep.mubr.bf16.mxu0 0
        %1338 = vmatmul.mubr.bf16.gmra.mrb[0].mxu0 %v1247
        %v1339 = vpop.f32.mrb[0].mxu0
        %v1340 = vadd.f32 %v1211, %v1339
        %v1341 = vpop.f32.mrb[0].mxu0
        %v1342 = vpop.f32.mrb[0].mxu0
        %v1343 = vadd.f32 %v1211, %v1342
        %v1344 = vpop.f32.mrb[0].mxu0
        %1345 = vdwg.mxu0
        %s1346 = scalar_lea.vmem %s280, 128 [#allocation2]
        %1347 = vst.msk [vmem:[%s1346] sm:$0xff] %vm816, %v1284
        %1348 = vst.msk [vmem:[%s1346 + $0x8] sm:$0xff] %vm816, %v1287
        %1349 = vst.msk [vmem:[%s1346 + $0x10] sm:$0xff] %vm816, %v1292
        %1350 = vst.msk [vmem:[%s1346 + $0x18] sm:$0xff] %vm816, %v1295
        %1351 = vst.msk [vmem:[%s1346 + $0x20] sm:$0xff] %vm816, %v1300
        %1352 = vst.msk [vmem:[%s1346 + $0x28] sm:$0xff] %vm816, %v1303
        %1353 = vst.msk [vmem:[%s1346 + $0x30] sm:$0xff] %vm816, %v1308
        %1354 = vst.msk [vmem:[%s1346 + $0x38] sm:$0xff] %vm816, %v1311
        %1355 = vst.msk [vmem:[%s1346 + $0x40] sm:$0xff] %vm816, %v1316
        %1356 = vst.msk [vmem:[%s1346 + $0x48] sm:$0xff] %vm816, %v1319
        %1357 = vst.msk [vmem:[%s1346 + $0x50] sm:$0xff] %vm816, %v1324
        %1358 = vst.msk [vmem:[%s1346 + $0x58] sm:$0xff] %vm816, %v1327
        %1359 = vst.msk [vmem:[%s1346 + $0x60] sm:$0xff] %vm816, %v1332
        %1360 = vst.msk [vmem:[%s1346 + $0x68] sm:$0xff] %vm816, %v1335
        %1361 = vst.msk [vmem:[%s1346 + $0x70] sm:$0xff] %vm816, %v1340
        %1362 = vst.msk [vmem:[%s1346 + $0x78] sm:$0xff] %vm816, %v1343
        %s1363 = sand.u32 %s178, 1
        %s1364 = sand.u32 %s178, 1
        %s1365 = smul.addr %s1364, 256
        %s1366 = scalar_lea.vmem [#allocation2], %s1365
        // Predicated region
        $region49: #{tpu_custom_call.1} parent=47 // pred_check
          %p1367 = pneg %p188
        $region50: #{tpu_custom_call.1} parent=47 // pred_check_branch
          %1369 = sbr.rel (%p1367) target = $region52
        $region51: #{tpu_custom_call.1} parent=47 // pred_region
          %s1370 = smul.u32 32, %s18
          %s1371 = ssub.s32 38, %s1370
          %p1372 = scmp.lt.s32.totalorder %s1371, 32
          %s1373 = scalar_select %p1372, %s1371, 32
          %s1374 = smul.u32 128, %s1373
          %p1375 = scmp.ne.s32.totalorder 0, %s1374
          %s1376 = smul.addr %s1370, 8
          %s1377 = scalar_lea.vmem %s7, %s1376
          // Predicated region
          $region53: #{tpu_custom_call.1} parent=51 // pred_check
            %p1378 = pneg %p1375
          $region54: #{tpu_custom_call.1} parent=51 // pred_check_branch
            %1380 = sbr.rel (%p1378) target = $region56
          $region55: #{tpu_custom_call.1} parent=51 // pred_region
            // Predicated region
            $region57: #{tpu_custom_call.1} parent=55 // pred_check
              _
            $region58: #{tpu_custom_call.1} parent=55 // pred_check_branch
              %1382 = sbr.rel (0) target = $region60
            $region59: #{tpu_custom_call.1} parent=55 // pred_region
              // Predicated region
              $region79: #{tpu_custom_call.1} parent=59 // pred_check
                _
              $region80: #{tpu_custom_call.1} parent=59 // pred_check_branch
                %1493 = sbr.rel (0) target = $region82
              $region81: #{tpu_custom_call.1} parent=59 // pred_region
                %s1494 = sshrl.u32 %s1373, 5
                // While loop
                $region83: #{tpu_custom_call.1} parent=81 // loop_pre_header
                  _
                $region84: #{tpu_custom_call.1} parent=81 // loop_header
                  %s1496 = sphi 0, %s1498
                  %p1497 = scmp.ge.s32.totalorder %s1496, %s1494
                  %s1501 = sphi 0, %s1570
                  %s1502 = sphi %s1366, %s1573
                  %s1503 = sphi %s1377, %s1574
                $region85: #{tpu_custom_call.1} parent=81 // loop_header_branch
                  %1500 = sbr.rel (%p1497) target = $region89
                $region86: #{tpu_custom_call.1} parent=81 // loop_body
                  %v1504 = vld [vmem:[%s1502] sm:$0xff]
                  %1505 = vst [vmem:[%s1503] sm:$0xff] %v1504
                  %v1506 = vld [vmem:[%s1502 + $0x8] sm:$0xff]
                  %1507 = vst [vmem:[%s1503 + $0x8] sm:$0xff] %v1506
                  %v1508 = vld [vmem:[%s1502 + $0x10] sm:$0xff]
                  %1509 = vst [vmem:[%s1503 + $0x10] sm:$0xff] %v1508
                  %v1510 = vld [vmem:[%s1502 + $0x18] sm:$0xff]
                  %1511 = vst [vmem:[%s1503 + $0x18] sm:$0xff] %v1510
                  %v1512 = vld [vmem:[%s1502 + $0x20] sm:$0xff]
                  %1513 = vst [vmem:[%s1503 + $0x20] sm:$0xff] %v1512
                  %v1514 = vld [vmem:[%s1502 + $0x28] sm:$0xff]
                  %1515 = vst [vmem:[%s1503 + $0x28] sm:$0xff] %v1514
                  %v1516 = vld [vmem:[%s1502 + $0x30] sm:$0xff]
                  %1517 = vst [vmem:[%s1503 + $0x30] sm:$0xff] %v1516
                  %v1518 = vld [vmem:[%s1502 + $0x38] sm:$0xff]
                  %1519 = vst [vmem:[%s1503 + $0x38] sm:$0xff] %v1518
                  %v1520 = vld [vmem:[%s1502 + $0x40] sm:$0xff]
                  %1521 = vst [vmem:[%s1503 + $0x40] sm:$0xff] %v1520
                  %v1522 = vld [vmem:[%s1502 + $0x48] sm:$0xff]
                  %1523 = vst [vmem:[%s1503 + $0x48] sm:$0xff] %v1522
                  %v1524 = vld [vmem:[%s1502 + $0x50] sm:$0xff]
                  %1525 = vst [vmem:[%s1503 + $0x50] sm:$0xff] %v1524
                  %v1526 = vld [vmem:[%s1502 + $0x58] sm:$0xff]
                  %1527 = vst [vmem:[%s1503 + $0x58] sm:$0xff] %v1526
                  %v1528 = vld [vmem:[%s1502 + $0x60] sm:$0xff]
                  %1529 = vst [vmem:[%s1503 + $0x60] sm:$0xff] %v1528
                  %v1530 = vld [vmem:[%s1502 + $0x68] sm:$0xff]
                  %1531 = vst [vmem:[%s1503 + $0x68] sm:$0xff] %v1530
                  %v1532 = vld [vmem:[%s1502 + $0x70] sm:$0xff]
                  %1533 = vst [vmem:[%s1503 + $0x70] sm:$0xff] %v1532
                  %v1534 = vld [vmem:[%s1502 + $0x78] sm:$0xff]
                  %1535 = vst [vmem:[%s1503 + $0x78] sm:$0xff] %v1534
                  %v1536 = vld [vmem:[%s1502 + $0x80] sm:$0xff]
                  %1537 = vst [vmem:[%s1503 + $0x80] sm:$0xff] %v1536
                  %v1538 = vld [vmem:[%s1502 + $0x88] sm:$0xff]
                  %1539 = vst [vmem:[%s1503 + $0x88] sm:$0xff] %v1538
                  %v1540 = vld [vmem:[%s1502 + $0x90] sm:$0xff]
                  %1541 = vst [vmem:[%s1503 + $0x90] sm:$0xff] %v1540
                  %v1542 = vld [vmem:[%s1502 + $0x98] sm:$0xff]
                  %1543 = vst [vmem:[%s1503 + $0x98] sm:$0xff] %v1542
                  %v1544 = vld [vmem:[%s1502 + $0xa0] sm:$0xff]
                  %1545 = vst [vmem:[%s1503 + $0xa0] sm:$0xff] %v1544
                  %v1546 = vld [vmem:[%s1502 + $0xa8] sm:$0xff]
                  %1547 = vst [vmem:[%s1503 + $0xa8] sm:$0xff] %v1546
                  %v1548 = vld [vmem:[%s1502 + $0xb0] sm:$0xff]
                  %1549 = vst [vmem:[%s1503 + $0xb0] sm:$0xff] %v1548
                  %v1550 = vld [vmem:[%s1502 + $0xb8] sm:$0xff]
                  %1551 = vst [vmem:[%s1503 + $0xb8] sm:$0xff] %v1550
                  %v1552 = vld [vmem:[%s1502 + $0xc0] sm:$0xff]
                  %1553 = vst [vmem:[%s1503 + $0xc0] sm:$0xff] %v1552
                  %v1554 = vld [vmem:[%s1502 + $0xc8] sm:$0xff]
                  %1555 = vst [vmem:[%s1503 + $0xc8] sm:$0xff] %v1554
                  %v1556 = vld [vmem:[%s1502 + $0xd0] sm:$0xff]
                  %1557 = vst [vmem:[%s1503 + $0xd0] sm:$0xff] %v1556
                  %v1558 = vld [vmem:[%s1502 + $0xd8] sm:$0xff]
                  %1559 = vst [vmem:[%s1503 + $0xd8] sm:$0xff] %v1558
                  %v1560 = vld [vmem:[%s1502 + $0xe0] sm:$0xff]
                  %1561 = vst [vmem:[%s1503 + $0xe0] sm:$0xff] %v1560
                  %v1562 = vld [vmem:[%s1502 + $0xe8] sm:$0xff]
                  %1563 = vst [vmem:[%s1503 + $0xe8] sm:$0xff] %v1562
                  %v1564 = vld [vmem:[%s1502 + $0xf0] sm:$0xff]
                  %1565 = vst [vmem:[%s1503 + $0xf0] sm:$0xff] %v1564
                  %v1566 = vld [vmem:[%s1502 + $0xf8] sm:$0xff]
                  %1567 = vst [vmem:[%s1503 + $0xf8] sm:$0xff] %v1566
                  %s1568 = sadd.s32 1, %s1501
                  %p1569 = scmp.ge.s32.totalorder %s1568, %s1494
                  %s1570 = scalar_select %p1569, 0, %s1568
                  %s1571 = smul.u32 %s1570, 256
                  %s1572 = smul.u32 %s1570, 256
                  %s1573 = scalar_lea.vmem %s1366, %s1571 [#allocation2]
                  %s1574 = scalar_lea.vmem %s1377, %s1572
                $region87: #{tpu_custom_call.1} parent=81 // loop_footer
                  %s1498 = sadd.s32 %s1496, 1
                $region88: #{tpu_custom_call.1} parent=81 // loop_footer_branch
                  %1495 = sbr.rel target = $region84
                $region89: #{tpu_custom_call.1} parent=81 // loop_exit
                  _
                %s1575 = sshrl.u32 %s1373, 5
                %s1576 = sand.u32 %s1373, 31
                %s1577 = smul.u32 %s1575, 32
                %s1578 = smul.u32 8, %s1577
                %s1579 = scalar_lea.vmem %s1366, %s1578 [#allocation2]
                %s1580 = smul.u32 8, %s1577
                %s1581 = scalar_lea.vmem %s1377, %s1580
                // While loop
                $region90: #{tpu_custom_call.1} parent=81 // loop_pre_header
                  _
                $region91: #{tpu_custom_call.1} parent=81 // loop_header
                  %s1583 = sphi 0, %s1585
                  %p1584 = scmp.ge.s32.totalorder %s1583, %s1576
                  %s1588 = sphi 0, %s1595
                  %s1589 = sphi %s1579, %s1598
                  %s1590 = sphi %s1581, %s1599
                $region92: #{tpu_custom_call.1} parent=81 // loop_header_branch
                  %1587 = sbr.rel (%p1584) target = $region96
                $region93: #{tpu_custom_call.1} parent=81 // loop_body
                  %v1591 = vld [vmem:[%s1589] sm:$0xff]
                  %1592 = vst [vmem:[%s1590] sm:$0xff] %v1591
                  %s1593 = sadd.s32 1, %s1588
                  %p1594 = scmp.ge.s32.totalorder %s1593, %s1576
                  %s1595 = scalar_select %p1594, 0, %s1593
                  %s1596 = smul.u32 %s1595, 8
                  %s1597 = smul.u32 %s1595, 8
                  %s1598 = scalar_lea.vmem %s1579, %s1596 [#allocation2]
                  %s1599 = scalar_lea.vmem %s1581, %s1597
                $region94: #{tpu_custom_call.1} parent=81 // loop_footer
                  %s1585 = sadd.s32 %s1583, 1
                $region95: #{tpu_custom_call.1} parent=81 // loop_footer_branch
                  %1582 = sbr.rel target = $region91
                $region96: #{tpu_custom_call.1} parent=81 // loop_exit
                  _
              $region82: #{tpu_custom_call.1} parent=59 // pred_fallthru
                _
              // Predicated region
              $region97: #{tpu_custom_call.1} parent=59 // pred_check
                _
              $region98: #{tpu_custom_call.1} parent=59 // pred_check_branch
                %1601 = sbr.rel target = $region100
              $region99: #{tpu_custom_call.1} parent=59 // pred_region
                _
              $region100: #{tpu_custom_call.1} parent=59 // pred_fallthru
                _
            $region60: #{tpu_custom_call.1} parent=55 // pred_fallthru
              _
            // Predicated region
            $region61: #{tpu_custom_call.1} parent=55 // pred_check
              _
            $region62: #{tpu_custom_call.1} parent=55 // pred_check_branch
              %1384 = sbr.rel target = $region64
            $region63: #{tpu_custom_call.1} parent=55 // pred_region
              %s1386 = sshrl.u32 %s1373, 5
              // While loop
              $region65: #{tpu_custom_call.1} parent=63 // loop_pre_header
                _
              $region66: #{tpu_custom_call.1} parent=63 // loop_header
                %s1388 = sphi 0, %s1390
                %p1389 = scmp.ge.s32.totalorder %s1388, %s1386
                %s1393 = sphi 0, %s1462
                %s1394 = sphi %s1366, %s1465
                %s1395 = sphi %s1377, %s1466
              $region67: #{tpu_custom_call.1} parent=63 // loop_header_branch
                %1392 = sbr.rel (%p1389) target = $region71
              $region68: #{tpu_custom_call.1} parent=63 // loop_body
                %v1396 = vld [vmem:[%s1394] sm:$0xff]
                %1397 = vst [vmem:[%s1395] sm:$0xff] %v1396
                %v1398 = vld [vmem:[%s1394 + $0x8] sm:$0xff]
                %1399 = vst [vmem:[%s1395 + $0x8] sm:$0xff] %v1398
                %v1400 = vld [vmem:[%s1394 + $0x10] sm:$0xff]
                %1401 = vst [vmem:[%s1395 + $0x10] sm:$0xff] %v1400
                %v1402 = vld [vmem:[%s1394 + $0x18] sm:$0xff]
                %1403 = vst [vmem:[%s1395 + $0x18] sm:$0xff] %v1402
                %v1404 = vld [vmem:[%s1394 + $0x20] sm:$0xff]
                %1405 = vst [vmem:[%s1395 + $0x20] sm:$0xff] %v1404
                %v1406 = vld [vmem:[%s1394 + $0x28] sm:$0xff]
                %1407 = vst [vmem:[%s1395 + $0x28] sm:$0xff] %v1406
                %v1408 = vld [vmem:[%s1394 + $0x30] sm:$0xff]
                %1409 = vst [vmem:[%s1395 + $0x30] sm:$0xff] %v1408
                %v1410 = vld [vmem:[%s1394 + $0x38] sm:$0xff]
                %1411 = vst [vmem:[%s1395 + $0x38] sm:$0xff] %v1410
                %v1412 = vld [vmem:[%s1394 + $0x40] sm:$0xff]
                %1413 = vst [vmem:[%s1395 + $0x40] sm:$0xff] %v1412
                %v1414 = vld [vmem:[%s1394 + $0x48] sm:$0xff]
                %1415 = vst [vmem:[%s1395 + $0x48] sm:$0xff] %v1414
                %v1416 = vld [vmem:[%s1394 + $0x50] sm:$0xff]
                %1417 = vst [vmem:[%s1395 + $0x50] sm:$0xff] %v1416
                %v1418 = vld [vmem:[%s1394 + $0x58] sm:$0xff]
                %1419 = vst [vmem:[%s1395 + $0x58] sm:$0xff] %v1418
                %v1420 = vld [vmem:[%s1394 + $0x60] sm:$0xff]
                %1421 = vst [vmem:[%s1395 + $0x60] sm:$0xff] %v1420
                %v1422 = vld [vmem:[%s1394 + $0x68] sm:$0xff]
                %1423 = vst [vmem:[%s1395 + $0x68] sm:$0xff] %v1422
                %v1424 = vld [vmem:[%s1394 + $0x70] sm:$0xff]
                %1425 = vst [vmem:[%s1395 + $0x70] sm:$0xff] %v1424
                %v1426 = vld [vmem:[%s1394 + $0x78] sm:$0xff]
                %1427 = vst [vmem:[%s1395 + $0x78] sm:$0xff] %v1426
                %v1428 = vld [vmem:[%s1394 + $0x80] sm:$0xff]
                %1429 = vst [vmem:[%s1395 + $0x80] sm:$0xff] %v1428
                %v1430 = vld [vmem:[%s1394 + $0x88] sm:$0xff]
                %1431 = vst [vmem:[%s1395 + $0x88] sm:$0xff] %v1430
                %v1432 = vld [vmem:[%s1394 + $0x90] sm:$0xff]
                %1433 = vst [vmem:[%s1395 + $0x90] sm:$0xff] %v1432
                %v1434 = vld [vmem:[%s1394 + $0x98] sm:$0xff]
                %1435 = vst [vmem:[%s1395 + $0x98] sm:$0xff] %v1434
                %v1436 = vld [vmem:[%s1394 + $0xa0] sm:$0xff]
                %1437 = vst [vmem:[%s1395 + $0xa0] sm:$0xff] %v1436
                %v1438 = vld [vmem:[%s1394 + $0xa8] sm:$0xff]
                %1439 = vst [vmem:[%s1395 + $0xa8] sm:$0xff] %v1438
                %v1440 = vld [vmem:[%s1394 + $0xb0] sm:$0xff]
                %1441 = vst [vmem:[%s1395 + $0xb0] sm:$0xff] %v1440
                %v1442 = vld [vmem:[%s1394 + $0xb8] sm:$0xff]
                %1443 = vst [vmem:[%s1395 + $0xb8] sm:$0xff] %v1442
                %v1444 = vld [vmem:[%s1394 + $0xc0] sm:$0xff]
                %1445 = vst [vmem:[%s1395 + $0xc0] sm:$0xff] %v1444
                %v1446 = vld [vmem:[%s1394 + $0xc8] sm:$0xff]
                %1447 = vst [vmem:[%s1395 + $0xc8] sm:$0xff] %v1446
                %v1448 = vld [vmem:[%s1394 + $0xd0] sm:$0xff]
                %1449 = vst [vmem:[%s1395 + $0xd0] sm:$0xff] %v1448
                %v1450 = vld [vmem:[%s1394 + $0xd8] sm:$0xff]
                %1451 = vst [vmem:[%s1395 + $0xd8] sm:$0xff] %v1450
                %v1452 = vld [vmem:[%s1394 + $0xe0] sm:$0xff]
                %1453 = vst [vmem:[%s1395 + $0xe0] sm:$0xff] %v1452
                %v1454 = vld [vmem:[%s1394 + $0xe8] sm:$0xff]
                %1455 = vst [vmem:[%s1395 + $0xe8] sm:$0xff] %v1454
                %v1456 = vld [vmem:[%s1394 + $0xf0] sm:$0xff]
                %1457 = vst [vmem:[%s1395 + $0xf0] sm:$0xff] %v1456
                %v1458 = vld [vmem:[%s1394 + $0xf8] sm:$0xff]
                %1459 = vst [vmem:[%s1395 + $0xf8] sm:$0xff] %v1458
                %s1460 = sadd.s32 1, %s1393
                %p1461 = scmp.ge.s32.totalorder %s1460, %s1386
                %s1462 = scalar_select %p1461, 0, %s1460
                %s1463 = smul.u32 %s1462, 256
                %s1464 = smul.u32 %s1462, 256
                %s1465 = scalar_lea.vmem %s1366, %s1463 [#allocation2]
                %s1466 = scalar_lea.vmem %s1377, %s1464
              $region69: #{tpu_custom_call.1} parent=63 // loop_footer
                %s1390 = sadd.s32 %s1388, 1
              $region70: #{tpu_custom_call.1} parent=63 // loop_footer_branch
                %1387 = sbr.rel target = $region66
              $region71: #{tpu_custom_call.1} parent=63 // loop_exit
                _
              %s1467 = sshrl.u32 %s1373, 5
              %s1468 = sand.u32 %s1373, 31
              %s1469 = smul.u32 %s1467, 32
              %s1470 = smul.u32 8, %s1469
              %s1471 = scalar_lea.vmem %s1366, %s1470 [#allocation2]
              %s1472 = smul.u32 8, %s1469
              %s1473 = scalar_lea.vmem %s1377, %s1472
              // While loop
              $region72: #{tpu_custom_call.1} parent=63 // loop_pre_header
                _
              $region73: #{tpu_custom_call.1} parent=63 // loop_header
                %s1475 = sphi 0, %s1477
                %p1476 = scmp.ge.s32.totalorder %s1475, %s1468
                %s1480 = sphi 0, %s1487
                %s1481 = sphi %s1471, %s1490
                %s1482 = sphi %s1473, %s1491
              $region74: #{tpu_custom_call.1} parent=63 // loop_header_branch
                %1479 = sbr.rel (%p1476) target = $region78
              $region75: #{tpu_custom_call.1} parent=63 // loop_body
                %v1483 = vld [vmem:[%s1481] sm:$0xff]
                %1484 = vst [vmem:[%s1482] sm:$0xff] %v1483
                %s1485 = sadd.s32 1, %s1480
                %p1486 = scmp.ge.s32.totalorder %s1485, %s1468
                %s1487 = scalar_select %p1486, 0, %s1485
                %s1488 = smul.u32 %s1487, 8
                %s1489 = smul.u32 %s1487, 8
                %s1490 = scalar_lea.vmem %s1471, %s1488 [#allocation2]
                %s1491 = scalar_lea.vmem %s1473, %s1489
              $region76: #{tpu_custom_call.1} parent=63 // loop_footer
                %s1477 = sadd.s32 %s1475, 1
              $region77: #{tpu_custom_call.1} parent=63 // loop_footer_branch
                %1474 = sbr.rel target = $region73
              $region78: #{tpu_custom_call.1} parent=63 // loop_exit
                _
            $region64: #{tpu_custom_call.1} parent=55 // pred_fallthru
              _
          $region56: #{tpu_custom_call.1} parent=51 // pred_fallthru
            _
          %1602 = vnop
        $region52: #{tpu_custom_call.1} parent=47 // pred_fallthru
          _
      $region48: #{tpu_custom_call.1} parent=5 // pred_fallthru
        _
      %p1603 = scmp.le.s32.totalorder 2, %s13
      // Predicated region
      $region101: #{tpu_custom_call.1} parent=5 // pred_check
        %p1604 = pneg %p1603
      $region102: #{tpu_custom_call.1} parent=5 // pred_check_branch
        %1606 = sbr.rel (%p1604) target = $region104
      $region103: #{tpu_custom_call.1} parent=5 // pred_region
        %s1607 = ssub.s32 %s13, 2
        // Predicated region
        $region105: #{tpu_custom_call.1} parent=103 // pred_check
          %p1608 = pneg %p194
        $region106: #{tpu_custom_call.1} parent=103 // pred_check_branch
          %1610 = sbr.rel (%p1608) target = $region108
        $region107: #{tpu_custom_call.1} parent=103 // pred_region
          %s1611 = sand.u32 %s179, 1
          %s1612 = sand.u32 %s179, 1
          %s1613 = smul.addr %s1612, 256
          %s1614 = scalar_lea.vmem [#allocation2], %s1613
        $region108: #{tpu_custom_call.1} parent=103 // pred_fallthru
          _
      $region104: #{tpu_custom_call.1} parent=5 // pred_fallthru
        _
    $region6: #{tpu_custom_call.1} parent=1 // loop_footer
      %s17 = sadd.s32 1, %s13
    $region7: #{tpu_custom_call.1} parent=1 // loop_footer_branch
      %12 = sbr.rel target = $region3
    $region8: #{tpu_custom_call.1} parent=1 // loop_exit
      _

</llo_original>
